<compile_context>
chip_gen: v5e
topology: v5e:2x2
jax: 0.10.0
libtpu: 0.0.40
codegen_flags: <defaults>
</compile_context>

<pallas_src>
import functools
import math

import jax
import jax.numpy as jnp
from jax.experimental import pallas as pl
from jax.experimental.pallas import tpu as pltpu


def _round_up(v: int, m: int) -> int:
    return ((v + m - 1) // m) * m


# TODO(synk): lax.erf has no guaranteed Mosaic lowering, so the exact-erf GELU is emulated
# with the Abramowitz-Stegun 7.1.26 rational approximation (max abs err ~1.5e-7).
def _erf_approx(x):
    a1, a2, a3, a4, a5 = 0.254829592, -0.284496736, 1.421413741, -1.453152027, 1.061405429
    p = 0.3275911
    sign = jnp.where(x >= 0.0, 1.0, -1.0)
    ax = jnp.abs(x)
    t = pl.reciprocal(1.0 + p * ax, approx=True)       # EUP slot, frees VALU
    poly = ((((a5 * t + a4) * t + a3) * t + a2) * t + a1) * t
    return sign * (1.0 - poly * jnp.exp(-ax * ax))


def _gelu_exact(x):
    return 0.5 * x * (1.0 + _erf_approx(x * (1.0 / math.sqrt(2.0))))


def _dsa_block_kernel(x_ref, w_in_ref, b_in_ref, w_out_ref, b_out_ref,
                      w_ff_ref, b_ff_ref, o_ref, attn_ref, yflat_ref,
                      *, n_heads, n_time_steps, n_state):
    """Grid = (batch_tiles, ff_column_tiles). Attention + out_proj + flatten run once
    per batch tile (column step 0) and persist in VMEM scratch; every step does one
    (Bt, T*D) @ (T*D, tn) delay-line matmul stripe + exact GELU."""
    T, D, H = n_time_steps, n_state, n_heads
    hd = D // H
    scale = 1.0 / math.sqrt(hd)
    BtT = x_ref.shape[0]                 # Bt * T
    Bt = BtT // T
    mm_dtype = w_ff_ref.dtype            # matmul input dtype (f32, or bf16 on v6e/v7x)

    @pl.when(pl.program_id(1) == 0)
    def _attention():
        x2 = x_ref[...]                                              # (Bt*T, D), f32

        # --- in_proj: one (Bt*T, D) @ (D, 3D) MXU matmul ---------------------
        qkv = jnp.dot(x2.astype(mm_dtype), w_in_ref[...],
                      preferred_element_type=jnp.float32) + b_in_ref[...]
        # leading-dim-only reshape (T is a multiple of 8 -> one sublane tile / sample)
        qkv3 = qkv.reshape(Bt, T, 3 * D)                             # (Bt, T, 3D)

        # --- multi-head attention, batched over the Bt samples via 3-D einsums
        for h in range(H):                                           # H small & static
            qh = qkv3[:, :, h * hd:(h + 1) * hd] * scale             # scale folded into q
            kh = qkv3[:, :, D + h * hd:D + (h + 1) * hd]
            vh = qkv3[:, :, 2 * D + h * hd:2 * D + (h + 1) * hd]
            s = jnp.einsum('bqd,bkd->bqk', qh, kh,
                           preferred_element_type=jnp.float32)       # (Bt, T, T)
            s = s - jnp.max(s, axis=-1, keepdims=True)
            p = jnp.exp(s)
            p = p * pl.reciprocal(jnp.sum(p, axis=-1, keepdims=True), approx=True)
            oh = jnp.einsum('bqk,bkd->bqd', p, vh,
                            preferred_element_type=jnp.float32)      # (Bt, T, hd)
            # gather heads into a (Bt*T, D) scratch so out_proj is a single matmul
            attn_ref[:, h * hd:(h + 1) * hd] = oh.reshape(BtT, hd)

        # --- out_proj: one (Bt*T, D) @ (D, D) matmul -------------------------
        y = jnp.dot(attn_ref[...].astype(mm_dtype), w_out_ref[...],
                    preferred_element_type=jnp.float32) + b_out_ref[...]
        y3 = y.reshape(Bt, T, D)

        # --- delay-line flatten: scatter time steps into lane slices ---------
        for t in range(T):
            yflat_ref[:, t * D:(t + 1) * D] = y3[:, t, :]

    # --- delay-line feed-forward: one (Bt, T*D) @ (T*D, tn) matmul + exact GELU
    ff = jnp.dot(yflat_ref[...].astype(mm_dtype), w_ff_ref[...],
                 preferred_element_type=jnp.float32) + b_ff_ref[...]
    o_ref[...] = _gelu_exact(ff).astype(o_ref.dtype)


def dynamical_self_attention_block(x, params, n_heads, *, batch_tile=None,
                                   ff_col_tile=None, use_bf16_matmul=False):
    """x: (B, T, D) float32. params: (w_in(3D,D), b_in(3D), w_out(D,D), b_out(D),
    w_ff(TD,TD), b_ff(TD)) -- exactly the PyTorch parameter layout."""
    w_in, b_in, w_out, b_out, w_ff, b_ff = params
    B, T, D = x.shape
    TD = T * D
    H = n_heads
    assert D % H == 0
    # NOTE: in-kernel (Bt*T, C) <-> (Bt, T, C) leading-dim reshapes assume T % 8 == 0.

    mm_dtype = jnp.bfloat16 if use_bf16_matmul else jnp.float32
    w_bytes = jnp.dtype(mm_dtype).itemsize

    # ---- batch tiling: Bt rows per grid step, batch zero-padded to a multiple of Bt
    if batch_tile is None:
        batch_tile = min(128, _round_up(B, 8))
    Bt = _round_up(max(8, batch_tile), 8)
    B_pad = _round_up(B, Bt)
    if B_pad != B:
        x = jnp.concatenate([x, jnp.zeros((B_pad - B, T, D), x.dtype)], axis=0)
    nb = B_pad // Bt

    # ---- W_ff column tiling: keep only a (TD, tn) stripe resident (v7x 64 MiB VMEM)
    vmem_budget = 24 * 1024 * 1024
    if ff_col_tile is None:
        if 2 * TD * TD * w_bytes <= vmem_budget:
            ff_col_tile = TD
        else:
            cands = [t for t in range(128, TD, 128)
                     if TD % t == 0 and 2 * TD * t * w_bytes <= vmem_budget]
            ff_col_tile = max(cands) if cands else TD
    tn = ff_col_tile
    assert TD % tn == 0
    nj = TD // tn

    # ---- plain-JAX glue: flatten batch/time, transpose weights to right-multiply
    #      form, 2-D biases (free HBM-side reshapes; no sublane-padded 3-D weight).
    x2 = x.reshape(B_pad * T, D).astype(jnp.float32)
    w_in_t = jnp.asarray(w_in).T.astype(mm_dtype)       # (D, 3D)
    w_out_t = jnp.asarray(w_out).T.astype(mm_dtype)     # (D, D)
    w_ff_t = jnp.asarray(w_ff).T.astype(mm_dtype)       # (TD, TD), plain 2-D
    b_in2 = b_in.reshape(1, 3 * D).astype(jnp.float32)
    b_out2 = b_out.reshape(1, D).astype(jnp.float32)
    b_ff2 = b_ff.reshape(1, TD).astype(jnp.float32)

    # advisory cost estimate so XLA can overlap neighbouring ops with the kernel
    flops = B_pad * (2 * T * D * 3 * D + 4 * T * T * D + 2 * T * D * D + 2 * TD * TD)
    transcendentals = B_pad * (H * T * T + TD)
    bytes_accessed = (4 * B_pad * T * D + 4 * B_pad * TD
                      + nb * w_bytes * (4 * D * D + TD * TD) + nb * 4 * (4 * D + TD))

    kernel = functools.partial(_dsa_block_kernel, n_heads=H, n_time_steps=T, n_state=D)

    out_flat = pl.pallas_call(
        kernel,
        out_shape=jax.ShapeDtypeStruct((B_pad, TD), jnp.float32),
        grid=(nb, nj),
        in_specs=[
            pl.BlockSpec((Bt * T, D), lambda b, j: (b, 0)),   # x (batch tile, flat over time)
            pl.BlockSpec((D, 3 * D), lambda b, j: (0, 0)),    # in_proj weight (transposed)
            pl.BlockSpec((1, 3 * D), lambda b, j: (0, 0)),    # in_proj bias
            pl.BlockSpec((D, D), lambda b, j: (0, 0)),        # out_proj weight (transposed)
            pl.BlockSpec((1, D), lambda b, j: (0, 0)),        # out_proj bias
            pl.BlockSpec((TD, tn), lambda b, j: (0, j)),      # delay-line weight stripe
            pl.BlockSpec((1, tn), lambda b, j: (0, j)),       # delay-line bias stripe
        ],
        out_specs=pl.BlockSpec((Bt, tn), lambda b, j: (b, j)),
        scratch_shapes=[
            pltpu.VMEM((Bt * T, D), jnp.float32),             # per-head attention gather
            pltpu.VMEM((Bt, TD), jnp.float32),                # flattened delay-line input
        ],
        compiler_params=pltpu.CompilerParams(
            dimension_semantics=("parallel", "arbitrary"),
            vmem_limit_bytes=64 * 1024 * 1024,
        ),
        cost_estimate=pl.CostEstimate(flops=int(flops),
                                      transcendentals=int(transcendentals),
                                      bytes_accessed=int(bytes_accessed)),
    )(x2, w_in_t, b_in2, w_out_t, b_out2, w_ff_t, b_ff2)

    return out_flat[:B].reshape(B, T, D)


def reference(x, params, n_heads):
    """Plain-JAX mirror of the PyTorch forward (sanity check)."""
    w_in, b_in, w_out, b_out, w_ff, b_ff = params
    B, T, D = x.shape
    hd = D // n_heads
    hi = jax.lax.Precision.HIGHEST
    qkv = jnp.einsum('btd,ed->bte', x, w_in, precision=hi) + b_in
    q, k, v = jnp.split(qkv, 3, axis=-1)

    def split_heads(a):
        return a.reshape(B, T, n_heads, hd).transpose(0, 2, 1, 3)

    qh, kh, vh = map(split_heads, (q, k, v))
    s = jnp.einsum('bhqd,bhkd->bhqk', qh, kh, precision=hi) / math.sqrt(hd)
    p = jax.nn.softmax(s, axis=-1)
    o = jnp.einsum('bhqk,bhkd->bhqd', p, vh, precision=hi)
    o = o.transpose(0, 2, 1, 3).reshape(B, T, D)
    y = jnp.einsum('btd,ed->bte', o, w_out, precision=hi) + b_out
    ff = jnp.dot(y.reshape(B, T * D), w_ff.T, precision=hi) + b_ff
    return jax.nn.gelu(ff, approximate=False).reshape(B, T, D)


if __name__ == "__main__":
    B, T, D, H = 2, 8, 4, 2          # batch, n_time_steps, n_state_variables, n_heads
    key = jax.random.PRNGKey(0)
    keys = jax.random.split(key, 7)

    x = jax.random.normal(keys[0], (B, T, D), jnp.float32)
    w_in = jax.random.normal(keys[1], (3 * D, D), jnp.float32) * (1.0 / math.sqrt(D))
    b_in = jax.random.normal(keys[2], (3 * D,), jnp.float32) * 0.02
    w_out = jax.random.normal(keys[3], (D, D), jnp.float32) * (1.0 / math.sqrt(D))
    b_out = jax.random.normal(keys[4], (D,), jnp.float32) * 0.02
    w_ff = jax.random.normal(keys[5], (T * D, T * D), jnp.float32) * (1.0 / math.sqrt(T * D))
    b_ff = jax.random.normal(keys[6], (T * D,), jnp.float32) * 0.02
    params = (w_in, b_in, w_out, b_out, w_ff, b_ff)

    out = dynamical_self_attention_block(x, params, H)
    out = jax.block_until_ready(out)

    ref = reference(x, params, H)
    assert out.shape == (B, T, D)
    max_err = float(jnp.max(jnp.abs(out - ref)))
    assert jnp.allclose(out, ref, atol=2e-2, rtol=2e-2), max_err

    print("KERNEL_OK")
</pallas_src>

<mosaic_0001>
module attributes {stable_mosaic.version = 11 : i64} {
  func.func @_dsa_block_kernel(%arg0: i32, %arg1: i32, %arg2: memref<64x4xf32, #tpu.memory_space<vmem>>, %arg3: memref<4x12xf32, #tpu.memory_space<vmem>>, %arg4: memref<1x12xf32, #tpu.memory_space<vmem>>, %arg5: memref<4x4xf32, #tpu.memory_space<vmem>>, %arg6: memref<1x4xf32, #tpu.memory_space<vmem>>, %arg7: memref<32x32xf32, #tpu.memory_space<vmem>>, %arg8: memref<1x32xf32, #tpu.memory_space<vmem>>, %arg9: memref<8x32xf32, #tpu.memory_space<vmem>>, %arg10: memref<64x4xf32, #tpu.memory_space<vmem>>, %arg11: memref<8x32xf32, #tpu.memory_space<vmem>>) attributes {dimension_semantics = [#tpu.dimension_semantics<parallel>, #tpu.dimension_semantics<arbitrary>], iteration_bounds = array<i64: 1, 1>, scalar_prefetch = 0 : i64, scratch_operands = 2 : i64, tpu.core_type = #tpu.core_type<tc>, window_params = [{transform_indices = @transform_0, window_bounds = array<i64: 64, 4>}, {pipeline_mode = #tpu.pipeline_mode<synchronous>, transform_indices = @transform_1, window_bounds = array<i64: 4, 12>}, {pipeline_mode = #tpu.pipeline_mode<synchronous>, transform_indices = @transform_2, window_bounds = array<i64: 1, 12>}, {pipeline_mode = #tpu.pipeline_mode<synchronous>, transform_indices = @transform_3, window_bounds = array<i64: 4, 4>}, {pipeline_mode = #tpu.pipeline_mode<synchronous>, transform_indices = @transform_4, window_bounds = array<i64: 1, 4>}, {transform_indices = @transform_5, window_bounds = array<i64: 32, 32>}, {transform_indices = @transform_6, window_bounds = array<i64: 1, 32>}, {transform_indices = @transform_7, window_bounds = array<i64: 8, 32>}]} {
    %c0_i32 = arith.constant 0 : i32
    %0 = arith.cmpi eq, %arg1, %c0_i32 : i32
    %1 = arith.extui %0 : i1 to i32
    %c0_i32_0 = arith.constant 0 : i32
    %2 = arith.cmpi ne, %1, %c0_i32_0 : i32
    scf.if %2 {
      %c0_23 = arith.constant 0 : index
      %c0_24 = arith.constant 0 : index
      %50 = vector.load %arg2[%c0_23, %c0_24] : memref<64x4xf32, #tpu.memory_space<vmem>>, vector<64x4xf32>
      %c0_25 = arith.constant 0 : index
      %c0_26 = arith.constant 0 : index
      %51 = vector.load %arg3[%c0_25, %c0_26] : memref<4x12xf32, #tpu.memory_space<vmem>>, vector<4x12xf32>
      %cst_27 = arith.constant dense<0.000000e+00> : vector<64x12xf32>
      %52 = tpu.matmul %50, %51, %cst_27 {dimension_numbers = #tpu.dot_dimension_numbers<[1], [0], [0], [1], [0, 0, 1, 1], [], []>} : vector<64x4xf32>, vector<4x12xf32>, vector<64x12xf32> -> vector<64x12xf32>
      %c0_28 = arith.constant 0 : index
      %c0_29 = arith.constant 0 : index
      %53 = vector.load %arg4[%c0_28, %c0_29] : memref<1x12xf32, #tpu.memory_space<vmem>>, vector<1x12xf32>
      %54 = vector.broadcast %53 : vector<1x12xf32> to vector<64x12xf32>
      %55 = arith.addf %52, %54 : vector<64x12xf32>
      %56 = vector.shape_cast %55 : vector<64x12xf32> to vector<8x8x12xf32>
      %57 = vector.extract_strided_slice %56 {offsets = [0, 0, 0], sizes = [8, 8, 2], strides = [1, 1, 1]} : vector<8x8x12xf32> to vector<8x8x2xf32>
      %cst_30 = arith.constant 0.707106769 : f32
      %58 = vector.broadcast %cst_30 : f32 to vector<8x8x2xf32>
      %59 = arith.mulf %57, %58 : vector<8x8x2xf32>
      %60 = vector.extract_strided_slice %56 {offsets = [0, 0, 4], sizes = [8, 8, 2], strides = [1, 1, 1]} : vector<8x8x12xf32> to vector<8x8x2xf32>
      %61 = vector.extract_strided_slice %56 {offsets = [0, 0, 8], sizes = [8, 8, 2], strides = [1, 1, 1]} : vector<8x8x12xf32> to vector<8x8x2xf32>
      "tpu.trace_start"() <{level = 10 : i32, message = "bqd,bkd->bqk"}> : () -> ()
      %cst_31 = arith.constant dense<0.000000e+00> : vector<8x8x8xf32>
      %62 = tpu.matmul %59, %60, %cst_31 {dimension_numbers = #tpu.dot_dimension_numbers<[2], [2], [1], [1], [0, 0, 0, 1, 1, 1], [0], [0]>} : vector<8x8x2xf32>, vector<8x8x2xf32>, vector<8x8x8xf32> -> vector<8x8x8xf32>
      "tpu.trace_stop"() : () -> ()
      %cst_32 = arith.constant dense<0xFF800000> : vector<8x8xf32>
      %63 = vector.multi_reduction <maximumf>, %62, %cst_32 [2] : vector<8x8x8xf32> to vector<8x8xf32>
      %64 = vector.shape_cast %63 : vector<8x8xf32> to vector<8x8x1xf32>
      %65 = vector.broadcast %64 : vector<8x8x1xf32> to vector<8x8x8xf32>
      %66 = arith.subf %62, %65 : vector<8x8x8xf32>
      %67 = math.exp %66 : vector<8x8x8xf32>
      %cst_33 = arith.constant dense<0.000000e+00> : vector<8x8xf32>
      %68 = vector.multi_reduction <add>, %67, %cst_33 [2] : vector<8x8x8xf32> to vector<8x8xf32>
      %69 = vector.shape_cast %68 : vector<8x8xf32> to vector<8x8x1xf32>
      %70 = tpu.reciprocal %69 {approx = true} : vector<8x8x1xf32> -> vector<8x8x1xf32>
      %71 = vector.broadcast %70 : vector<8x8x1xf32> to vector<8x8x8xf32>
      %72 = arith.mulf %67, %71 : vector<8x8x8xf32>
      "tpu.trace_start"() <{level = 10 : i32, message = "bqk,bkd->bqd"}> : () -> ()
      %cst_34 = arith.constant dense<0.000000e+00> : vector<8x8x2xf32>
      %73 = tpu.matmul %72, %61, %cst_34 {dimension_numbers = #tpu.dot_dimension_numbers<[2], [1], [1], [2], [0, 0, 0, 1, 1, 2], [0], [0]>} : vector<8x8x8xf32>, vector<8x8x2xf32>, vector<8x8x2xf32> -> vector<8x8x2xf32>
      "tpu.trace_stop"() : () -> ()
      %74 = vector.shape_cast %73 : vector<8x8x2xf32> to vector<64x2xf32>
      %c0_35 = arith.constant 0 : index
      %c0_36 = arith.constant 0 : index
      %75 = vector.load %arg10[%c0_35, %c0_36] : memref<64x4xf32, #tpu.memory_space<vmem>>, vector<64x2xf32>
      tpu.vector_store %arg10[%c0_35, %c0_36], %74 {strides = array<i32>} : memref<64x4xf32, #tpu.memory_space<vmem>>, vector<64x2xf32>,
      %76 = vector.extract_strided_slice %56 {offsets = [0, 0, 2], sizes = [8, 8, 2], strides = [1, 1, 1]} : vector<8x8x12xf32> to vector<8x8x2xf32>
      %cst_37 = arith.constant 0.707106769 : f32
      %77 = vector.broadcast %cst_37 : f32 to vector<8x8x2xf32>
      %78 = arith.mulf %76, %77 : vector<8x8x2xf32>
      %79 = vector.extract_strided_slice %56 {offsets = [0, 0, 6], sizes = [8, 8, 2], strides = [1, 1, 1]} : vector<8x8x12xf32> to vector<8x8x2xf32>
      %80 = vector.extract_strided_slice %56 {offsets = [0, 0, 10], sizes = [8, 8, 2], strides = [1, 1, 1]} : vector<8x8x12xf32> to vector<8x8x2xf32>
      "tpu.trace_start"() <{level = 10 : i32, message = "bqd,bkd->bqk"}> : () -> ()
      %cst_38 = arith.constant dense<0.000000e+00> : vector<8x8x8xf32>
      %81 = tpu.matmul %78, %79, %cst_38 {dimension_numbers = #tpu.dot_dimension_numbers<[2], [2], [1], [1], [0, 0, 0, 1, 1, 1], [0], [0]>} : vector<8x8x2xf32>, vector<8x8x2xf32>, vector<8x8x8xf32> -> vector<8x8x8xf32>
      "tpu.trace_stop"() : () -> ()
      %cst_39 = arith.constant dense<0xFF800000> : vector<8x8xf32>
      %82 = vector.multi_reduction <maximumf>, %81, %cst_39 [2] : vector<8x8x8xf32> to vector<8x8xf32>
      %83 = vector.shape_cast %82 : vector<8x8xf32> to vector<8x8x1xf32>
      %84 = vector.broadcast %83 : vector<8x8x1xf32> to vector<8x8x8xf32>
      %85 = arith.subf %81, %84 : vector<8x8x8xf32>
      %86 = math.exp %85 : vector<8x8x8xf32>
      %cst_40 = arith.constant dense<0.000000e+00> : vector<8x8xf32>
      %87 = vector.multi_reduction <add>, %86, %cst_40 [2] : vector<8x8x8xf32> to vector<8x8xf32>
      %88 = vector.shape_cast %87 : vector<8x8xf32> to vector<8x8x1xf32>
      %89 = tpu.reciprocal %88 {approx = true} : vector<8x8x1xf32> -> vector<8x8x1xf32>
      %90 = vector.broadcast %89 : vector<8x8x1xf32> to vector<8x8x8xf32>
      %91 = arith.mulf %86, %90 : vector<8x8x8xf32>
      "tpu.trace_start"() <{level = 10 : i32, message = "bqk,bkd->bqd"}> : () -> ()
      %cst_41 = arith.constant dense<0.000000e+00> : vector<8x8x2xf32>
      %92 = tpu.matmul %91, %80, %cst_41 {dimension_numbers = #tpu.dot_dimension_numbers<[2], [1], [1], [2], [0, 0, 0, 1, 1, 2], [0], [0]>} : vector<8x8x8xf32>, vector<8x8x2xf32>, vector<8x8x2xf32> -> vector<8x8x2xf32>
      "tpu.trace_stop"() : () -> ()
      %93 = vector.shape_cast %92 : vector<8x8x2xf32> to vector<64x2xf32>
      %c0_42 = arith.constant 0 : index
      %c2 = arith.constant 2 : index
      %94 = vector.load %arg10[%c0_42, %c2] : memref<64x4xf32, #tpu.memory_space<vmem>>, vector<64x2xf32>
      tpu.vector_store %arg10[%c0_42, %c2], %93 {strides = array<i32>} : memref<64x4xf32, #tpu.memory_space<vmem>>, vector<64x2xf32>,
      %c0_43 = arith.constant 0 : index
      %c0_44 = arith.constant 0 : index
      %95 = vector.load %arg10[%c0_43, %c0_44] : memref<64x4xf32, #tpu.memory_space<vmem>>, vector<64x4xf32>
      %c0_45 = arith.constant 0 : index
      %c0_46 = arith.constant 0 : index
      %96 = vector.load %arg5[%c0_45, %c0_46] : memref<4x4xf32, #tpu.memory_space<vmem>>, vector<4x4xf32>
      %cst_47 = arith.constant dense<0.000000e+00> : vector<64x4xf32>
      %97 = tpu.matmul %95, %96, %cst_47 {dimension_numbers = #tpu.dot_dimension_numbers<[1], [0], [0], [1], [0, 0, 1, 1], [], []>} : vector<64x4xf32>, vector<4x4xf32>, vector<64x4xf32> -> vector<64x4xf32>
      %c0_48 = arith.constant 0 : index
      %c0_49 = arith.constant 0 : index
      %98 = vector.load %arg6[%c0_48, %c0_49] : memref<1x4xf32, #tpu.memory_space<vmem>>, vector<1x4xf32>
      %99 = vector.broadcast %98 : vector<1x4xf32> to vector<64x4xf32>
      %100 = arith.addf %97, %99 : vector<64x4xf32>
      %101 = vector.shape_cast %100 : vector<64x4xf32> to vector<8x8x4xf32>
      %102 = vector.extract_strided_slice %101 {offsets = [0, 0, 0], sizes = [8, 1, 4], strides = [1, 1, 1]} : vector<8x8x4xf32> to vector<8x1x4xf32>
      %103 = vector.shape_cast %102 : vector<8x1x4xf32> to vector<8x4xf32>
      %c0_50 = arith.constant 0 : index
      %c0_51 = arith.constant 0 : index
      %104 = vector.load %arg11[%c0_50, %c0_51] : memref<8x32xf32, #tpu.memory_space<vmem>>, vector<8x4xf32>
      tpu.vector_store %arg11[%c0_50, %c0_51], %103 {strides = array<i32>} : memref<8x32xf32, #tpu.memory_space<vmem>>, vector<8x4xf32>,
      %105 = vector.extract_strided_slice %101 {offsets = [0, 1, 0], sizes = [8, 1, 4], strides = [1, 1, 1]} : vector<8x8x4xf32> to vector<8x1x4xf32>
      %106 = vector.shape_cast %105 : vector<8x1x4xf32> to vector<8x4xf32>
      %c0_52 = arith.constant 0 : index
      %c4 = arith.constant 4 : index
      %107 = vector.load %arg11[%c0_52, %c4] : memref<8x32xf32, #tpu.memory_space<vmem>>, vector<8x4xf32>
      tpu.vector_store %arg11[%c0_52, %c4], %106 {strides = array<i32>} : memref<8x32xf32, #tpu.memory_space<vmem>>, vector<8x4xf32>,
      %108 = vector.extract_strided_slice %101 {offsets = [0, 2, 0], sizes = [8, 1, 4], strides = [1, 1, 1]} : vector<8x8x4xf32> to vector<8x1x4xf32>
      %109 = vector.shape_cast %108 : vector<8x1x4xf32> to vector<8x4xf32>
      %c0_53 = arith.constant 0 : index
      %c8 = arith.constant 8 : index
      %110 = vector.load %arg11[%c0_53, %c8] : memref<8x32xf32, #tpu.memory_space<vmem>>, vector<8x4xf32>
      tpu.vector_store %arg11[%c0_53, %c8], %109 {strides = array<i32>} : memref<8x32xf32, #tpu.memory_space<vmem>>, vector<8x4xf32>,
      %111 = vector.extract_strided_slice %101 {offsets = [0, 3, 0], sizes = [8, 1, 4], strides = [1, 1, 1]} : vector<8x8x4xf32> to vector<8x1x4xf32>
      %112 = vector.shape_cast %111 : vector<8x1x4xf32> to vector<8x4xf32>
      %c0_54 = arith.constant 0 : index
      %c12 = arith.constant 12 : index
      %113 = vector.load %arg11[%c0_54, %c12] : memref<8x32xf32, #tpu.memory_space<vmem>>, vector<8x4xf32>
      tpu.vector_store %arg11[%c0_54, %c12], %112 {strides = array<i32>} : memref<8x32xf32, #tpu.memory_space<vmem>>, vector<8x4xf32>,
      %114 = vector.extract_strided_slice %101 {offsets = [0, 4, 0], sizes = [8, 1, 4], strides = [1, 1, 1]} : vector<8x8x4xf32> to vector<8x1x4xf32>
      %115 = vector.shape_cast %114 : vector<8x1x4xf32> to vector<8x4xf32>
      %c0_55 = arith.constant 0 : index
      %c16 = arith.constant 16 : index
      %116 = vector.load %arg11[%c0_55, %c16] : memref<8x32xf32, #tpu.memory_space<vmem>>, vector<8x4xf32>
      tpu.vector_store %arg11[%c0_55, %c16], %115 {strides = array<i32>} : memref<8x32xf32, #tpu.memory_space<vmem>>, vector<8x4xf32>,
      %117 = vector.extract_strided_slice %101 {offsets = [0, 5, 0], sizes = [8, 1, 4], strides = [1, 1, 1]} : vector<8x8x4xf32> to vector<8x1x4xf32>
      %118 = vector.shape_cast %117 : vector<8x1x4xf32> to vector<8x4xf32>
      %c0_56 = arith.constant 0 : index
      %c20 = arith.constant 20 : index
      %119 = vector.load %arg11[%c0_56, %c20] : memref<8x32xf32, #tpu.memory_space<vmem>>, vector<8x4xf32>
      tpu.vector_store %arg11[%c0_56, %c20], %118 {strides = array<i32>} : memref<8x32xf32, #tpu.memory_space<vmem>>, vector<8x4xf32>,
      %120 = vector.extract_strided_slice %101 {offsets = [0, 6, 0], sizes = [8, 1, 4], strides = [1, 1, 1]} : vector<8x8x4xf32> to vector<8x1x4xf32>
      %121 = vector.shape_cast %120 : vector<8x1x4xf32> to vector<8x4xf32>
      %c0_57 = arith.constant 0 : index
      %c24 = arith.constant 24 : index
      %122 = vector.load %arg11[%c0_57, %c24] : memref<8x32xf32, #tpu.memory_space<vmem>>, vector<8x4xf32>
      tpu.vector_store %arg11[%c0_57, %c24], %121 {strides = array<i32>} : memref<8x32xf32, #tpu.memory_space<vmem>>, vector<8x4xf32>,
      %123 = vector.extract_strided_slice %101 {offsets = [0, 7, 0], sizes = [8, 1, 4], strides = [1, 1, 1]} : vector<8x8x4xf32> to vector<8x1x4xf32>
      %124 = vector.shape_cast %123 : vector<8x1x4xf32> to vector<8x4xf32>
      %c0_58 = arith.constant 0 : index
      %c28 = arith.constant 28 : index
      %125 = vector.load %arg11[%c0_58, %c28] : memref<8x32xf32, #tpu.memory_space<vmem>>, vector<8x4xf32>
      tpu.vector_store %arg11[%c0_58, %c28], %124 {strides = array<i32>} : memref<8x32xf32, #tpu.memory_space<vmem>>, vector<8x4xf32>,
    } else {
    }
    %c0 = arith.constant 0 : index
    %c0_1 = arith.constant 0 : index
    %3 = vector.load %arg11[%c0, %c0_1] : memref<8x32xf32, #tpu.memory_space<vmem>>, vector<8x32xf32>
    %c0_2 = arith.constant 0 : index
    %c0_3 = arith.constant 0 : index
    %4 = vector.load %arg7[%c0_2, %c0_3] : memref<32x32xf32, #tpu.memory_space<vmem>>, vector<32x32xf32>
    %cst = arith.constant dense<0.000000e+00> : vector<8x32xf32>
    %5 = tpu.matmul %3, %4, %cst {dimension_numbers = #tpu.dot_dimension_numbers<[1], [0], [0], [1], [0, 0, 1, 1], [], []>} : vector<8x32xf32>, vector<32x32xf32>, vector<8x32xf32> -> vector<8x32xf32>
    %c0_4 = arith.constant 0 : index
    %c0_5 = arith.constant 0 : index
    %6 = vector.load %arg8[%c0_4, %c0_5] : memref<1x32xf32, #tpu.memory_space<vmem>>, vector<1x32xf32>
    %7 = vector.broadcast %6 : vector<1x32xf32> to vector<8x32xf32>
    %8 = arith.addf %5, %7 : vector<8x32xf32>
    %cst_6 = arith.constant 5.000000e-01 : f32
    %9 = vector.broadcast %cst_6 : f32 to vector<8x32xf32>
    %10 = arith.mulf %9, %8 : vector<8x32xf32>
    %cst_7 = arith.constant 0.707106769 : f32
    %11 = vector.broadcast %cst_7 : f32 to vector<8x32xf32>
    %12 = arith.mulf %8, %11 : vector<8x32xf32>
    %cst_8 = arith.constant 0.000000e+00 : f32
    %13 = vector.broadcast %cst_8 : f32 to vector<8x32xf32>
    %14 = arith.cmpf oge, %12, %13 : vector<8x32xf32>
    %cst_9 = arith.constant 1.000000e+00 : f32
    %cst_10 = arith.constant -1.000000e+00 : f32
    %15 = vector.broadcast %cst_9 : f32 to vector<8x32xf32>
    %16 = vector.broadcast %cst_10 : f32 to vector<8x32xf32>
    %17 = arith.select %14, %15, %16 : vector<8x32xi1>, vector<8x32xf32>
    %18 = math.absf %12 : vector<8x32xf32>
    %cst_11 = arith.constant 0.327591091 : f32
    %19 = vector.broadcast %cst_11 : f32 to vector<8x32xf32>
    %20 = arith.mulf %19, %18 : vector<8x32xf32>
    %cst_12 = arith.constant 1.000000e+00 : f32
    %21 = vector.broadcast %cst_12 : f32 to vector<8x32xf32>
    %22 = arith.addf %21, %20 : vector<8x32xf32>
    %23 = tpu.reciprocal %22 {approx = true} : vector<8x32xf32> -> vector<8x32xf32>
    %cst_13 = arith.constant 1.06140542 : f32
    %24 = vector.broadcast %cst_13 : f32 to vector<8x32xf32>
    %25 = arith.mulf %24, %23 : vector<8x32xf32>
    %cst_14 = arith.constant -1.45315206 : f32
    %26 = vector.broadcast %cst_14 : f32 to vector<8x32xf32>
    %27 = arith.addf %25, %26 : vector<8x32xf32>
    %28 = arith.mulf %27, %23 : vector<8x32xf32>
    %cst_15 = arith.constant 1.42141378 : f32
    %29 = vector.broadcast %cst_15 : f32 to vector<8x32xf32>
    %30 = arith.addf %28, %29 : vector<8x32xf32>
    %31 = arith.mulf %30, %23 : vector<8x32xf32>
    %cst_16 = arith.constant -0.284496725 : f32
    %32 = vector.broadcast %cst_16 : f32 to vector<8x32xf32>
    %33 = arith.addf %31, %32 : vector<8x32xf32>
    %34 = arith.mulf %33, %23 : vector<8x32xf32>
    %cst_17 = arith.constant 0.254829586 : f32
    %35 = vector.broadcast %cst_17 : f32 to vector<8x32xf32>
    %36 = arith.addf %34, %35 : vector<8x32xf32>
    %37 = arith.mulf %36, %23 : vector<8x32xf32>
    %cst_18 = arith.constant 0.000000e+00 : f32
    %38 = vector.broadcast %cst_18 : f32 to vector<8x32xf32>
    %39 = arith.subf %38, %18 : vector<8x32xf32>
    %40 = arith.mulf %39, %18 : vector<8x32xf32>
    %41 = math.exp %40 : vector<8x32xf32>
    %42 = arith.mulf %37, %41 : vector<8x32xf32>
    %cst_19 = arith.constant 1.000000e+00 : f32
    %43 = vector.broadcast %cst_19 : f32 to vector<8x32xf32>
    %44 = arith.subf %43, %42 : vector<8x32xf32>
    %45 = arith.mulf %17, %44 : vector<8x32xf32>
    %cst_20 = arith.constant 1.000000e+00 : f32
    %46 = vector.broadcast %cst_20 : f32 to vector<8x32xf32>
    %47 = arith.addf %46, %45 : vector<8x32xf32>
    %48 = arith.mulf %10, %47 : vector<8x32xf32>
    %c0_21 = arith.constant 0 : index
    %c0_22 = arith.constant 0 : index
    %49 = vector.load %arg9[%c0_21, %c0_22] : memref<8x32xf32, #tpu.memory_space<vmem>>, vector<8x32xf32>
    tpu.vector_store %arg9[%c0_21, %c0_22], %48 {strides = array<i32>} : memref<8x32xf32, #tpu.memory_space<vmem>>, vector<8x32xf32>,
    return
  }
  func.func @transform_0(%arg0: i32, %arg1: i32) -> (i32, i32) {
    %c0_i32 = arith.constant 0 : i32
    %c0_i32_0 = arith.constant 0 : i32
    return %arg0, %c0_i32 : i32, i32
  }
  func.func @transform_1(%arg0: i32, %arg1: i32) -> (i32, i32) {
    %c0_i32 = arith.constant 0 : i32
    %c0_i32_0 = arith.constant 0 : i32
    %c0_i32_1 = arith.constant 0 : i32
    return %c0_i32, %c0_i32_0 : i32, i32
  }
  func.func @transform_2(%arg0: i32, %arg1: i32) -> (i32, i32) {
    %c0_i32 = arith.constant 0 : i32
    %c0_i32_0 = arith.constant 0 : i32
    %c0_i32_1 = arith.constant 0 : i32
    return %c0_i32, %c0_i32_0 : i32, i32
  }
  func.func @transform_3(%arg0: i32, %arg1: i32) -> (i32, i32) {
    %c0_i32 = arith.constant 0 : i32
    %c0_i32_0 = arith.constant 0 : i32
    %c0_i32_1 = arith.constant 0 : i32
    return %c0_i32, %c0_i32_0 : i32, i32
  }
  func.func @transform_4(%arg0: i32, %arg1: i32) -> (i32, i32) {
    %c0_i32 = arith.constant 0 : i32
    %c0_i32_0 = arith.constant 0 : i32
    %c0_i32_1 = arith.constant 0 : i32
    return %c0_i32, %c0_i32_0 : i32, i32
  }
  func.func @transform_5(%arg0: i32, %arg1: i32) -> (i32, i32) {
    %c0_i32 = arith.constant 0 : i32
    %c0_i32_0 = arith.constant 0 : i32
    return %c0_i32, %arg1 : i32, i32
  }
  func.func @transform_6(%arg0: i32, %arg1: i32) -> (i32, i32) {
    %c0_i32 = arith.constant 0 : i32
    %c0_i32_0 = arith.constant 0 : i32
    return %c0_i32, %arg1 : i32, i32
  }
  func.func @transform_7(%arg0: i32, %arg1: i32) -> (i32, i32) {
    %c0_i32 = arith.constant 0 : i32
    return %arg0, %arg1 : i32, i32
  }
}

</mosaic_0001>

<llo_original>
// kernel: tpu_custom_call.1
$region0: #{tpu_custom_call.1}
  #allocation0 [shape = 'u32[]', space=smem, size = 0x4, offset = 0x4, fixed_abs, tag = 'smem constant byte address 0x4 - core index']
  #allocation1 [shape = 'u32[72,128]{1,0:T(1,128)}', space=vmem, size = 0x9000, scoped, tag = 'internal scratch']
  #allocation2 [shape = 'f32[64,4]{1,0:T(8,128)}', space=vmem, size = 0x8000, scoped, tag = 'scratch operand']
  #allocation3 [shape = 'f32[8,32]{1,0:T(8,128)}', space=vmem, size = 0x1000, scoped, tag = 'scratch operand']
  %s0 = inlined_call_operand.vmem [shape: f32[64,4], index: 0, kind: input, shape index: {}]
  %s1 = inlined_call_operand.vmem [shape: f32[4,12], index: 1, kind: input, shape index: {}]
  %s2 = inlined_call_operand.vmem [shape: f32[1,12], index: 2, kind: input, shape index: {}]
  %s3 = inlined_call_operand.vmem [shape: f32[4,4], index: 3, kind: input, shape index: {}]
  %s4 = inlined_call_operand.vmem [shape: f32[1,4], index: 4, kind: input, shape index: {}]
  %s5 = inlined_call_operand.vmem [shape: f32[32,32], index: 5, kind: input, shape index: {}]
  %s6 = inlined_call_operand.vmem [shape: f32[1,32], index: 6, kind: input, shape index: {}]
  %s7 = inlined_call_operand.hbm [shape: f32[8,32], index: 7, kind: output, shape index: {}]
  %s8 = sld [smem:[#allocation0]]
  $region42: #{tpu_custom_call.1} parent=0
    _
  %s10 = ssub.s32 1, %s8
  %s11 = scalar_select 0, %s10, %s8
  $region1: #{tpu_custom_call.1} parent=0
    #allocation4 [shape = 'u8[4096]{0}', space=vmem, size = 0x1000, scoped, tag = 'output window, operand 0, single buffered']
    #allocation5 [shape = 's32[1]{0}', space=sflag, size = 0x4, scoped, tag = 'scoped memory for tpu_custom_call.1']
    %12 = vsyncpa [#allocation5], 0
    // Predicated region
    $region2: #{tpu_custom_call.1} parent=1 // pred_check
      _
    $region3: #{tpu_custom_call.1} parent=1 // pred_check_branch
      %14 = sbr.rel (0) target = $region5
    $region4: #{tpu_custom_call.1} parent=1 // pred_region
      _
    $region5: #{tpu_custom_call.1} parent=1 // pred_fallthru
      _
    // Predicated region
    $region6: #{tpu_custom_call.1} parent=1 // pred_check
      _
    $region7: #{tpu_custom_call.1} parent=1 // pred_check_branch
      %16 = sbr.rel (0) target = $region9
    $region8: #{tpu_custom_call.1} parent=1 // pred_region
      _
    $region9: #{tpu_custom_call.1} parent=1 // pred_fallthru
      _
    // Predicated region
    $region10: #{tpu_custom_call.1} parent=1 // pred_check
      _
    $region11: #{tpu_custom_call.1} parent=1 // pred_check_branch
      %18 = sbr.rel (0) target = $region13
    $region12: #{tpu_custom_call.1} parent=1 // pred_region
      _
    $region13: #{tpu_custom_call.1} parent=1 // pred_fallthru
      _
    // Predicated region
    $region14: #{tpu_custom_call.1} parent=1 // pred_check
      _
    $region15: #{tpu_custom_call.1} parent=1 // pred_check_branch
      %20 = sbr.rel (0) target = $region17
    $region16: #{tpu_custom_call.1} parent=1 // pred_region
      _
    $region17: #{tpu_custom_call.1} parent=1 // pred_fallthru
      _
    // Predicated region
    $region18: #{tpu_custom_call.1} parent=1 // pred_check
      _
    $region19: #{tpu_custom_call.1} parent=1 // pred_check_branch
      %22 = sbr.rel (0) target = $region21
    $region20: #{tpu_custom_call.1} parent=1 // pred_region
      _
    $region21: #{tpu_custom_call.1} parent=1 // pred_fallthru
      _
    // Predicated region
    $region22: #{tpu_custom_call.1} parent=1 // pred_check
      _
    $region23: #{tpu_custom_call.1} parent=1 // pred_check_branch
      %24 = sbr.rel (0) target = $region25
    $region24: #{tpu_custom_call.1} parent=1 // pred_region
      _
    $region25: #{tpu_custom_call.1} parent=1 // pred_fallthru
      _
    // Predicated region
    $region26: #{tpu_custom_call.1} parent=1 // pred_check
      _
    $region27: #{tpu_custom_call.1} parent=1 // pred_check_branch
      %26 = sbr.rel (0) target = $region29
    $region28: #{tpu_custom_call.1} parent=1 // pred_region
      _
    $region29: #{tpu_custom_call.1} parent=1 // pred_fallthru
      _
    %p27 = scmp.eq.s32.totalorder 0, 0
    // Predicated region
    $region30: #{tpu_custom_call.1} parent=1 // pred_check
      %p28 = pneg %p27
    $region31: #{tpu_custom_call.1} parent=1 // pred_check_branch
      %30 = sbr.rel (%p28) target = $region33
    $region32: #{tpu_custom_call.1} parent=1 // pred_region
      %v31 = vld [vmem:[%s0] sm:$0xff]
      %v32 = vld [vmem:[%s0 + $0x8] sm:$0xff]
      %v33 = vld [vmem:[%s0 + $0x10] sm:$0xff]
      %v34 = vld [vmem:[%s0 + $0x18] sm:$0xff]
      %v35 = vld [vmem:[%s0 + $0x20] sm:$0xff]
      %v36 = vld [vmem:[%s0 + $0x28] sm:$0xff]
      %v37 = vld [vmem:[%s0 + $0x30] sm:$0xff]
      %v38 = vld [vmem:[%s0 + $0x38] sm:$0xff]
      %v39 = vld [vmem:[%s1] sm:$0xf]
      %v40 = vld [vmem:[%s2] sm:$0x1]
      %v42 = vperm.slane %v40, 0
      %vm44 = vcmask 31744
      %v46 = vsel %vm44, %v31, 0
      %v49 = vsel %vm44, %v32, 0
      %v52 = vsel %vm44, %v33, 0
      %v55 = vsel %vm44, %v34, 0
      %v58 = vsel %vm44, %v35, 0
      %v61 = vsel %vm44, %v36, 0
      %v64 = vsel %vm44, %v37, 0
      %v67 = vsel %vm44, %v38, 0
      %vm69 = vcmask 1043456
      %v71 = vsel %vm69, %v39, 0
      %73 = vmatpush.msra.mxu0 0.0
      %74 = vmatpush.msra.mxu0 0.0
      %75 = vmatpush.msra.mxu0 0.0
      %76 = vmatpush.msra.mxu0 0.0
      %77 = vmatpush.msra.mxu0 0.0
      %78 = vmatpush.msra.mxu0 0.0
      %79 = vmatpush.msra.mxu0 0.0
      %80 = vmatpush.msra.mxu0 0.0
      %81 = vmatpush.msra.mxu0 0.0
      %82 = vmatpush.msra.mxu0 0.0
      %83 = vmatpush.msra.mxu0 0.0
      %84 = vmatpush.msra.mxu0 0.0
      %85 = vmatpush.msra.mxu0 0.0
      %86 = vmatpush.msra.mxu0 0.0
      %87 = vmatpush.msra.mxu0 0.0
      %88 = vmatpush.msra.mxu0 %v71
      %89 = vmatmul.f32.gmra.mxu0 %v46
      %v90 = vpop.f32.mrf.mxu0
      %v91 = vadd.f32 %v42, %v90
      %92 = vmatmul.f32.gmra.mxu0 %v49
      %v93 = vpop.f32.mrf.mxu0
      %v94 = vadd.f32 %v42, %v93
      %95 = vmatmul.f32.gmra.mxu0 %v52
      %v96 = vpop.f32.mrf.mxu0
      %v97 = vadd.f32 %v42, %v96
      %98 = vmatmul.f32.gmra.mxu0 %v55
      %v99 = vpop.f32.mrf.mxu0
      %v100 = vadd.f32 %v42, %v99
      %101 = vmatmul.f32.gmra.mxu0 %v58
      %v102 = vpop.f32.mrf.mxu0
      %v103 = vadd.f32 %v42, %v102
      %104 = vmatmul.f32.gmra.mxu0 %v61
      %v105 = vpop.f32.mrf.mxu0
      %v106 = vadd.f32 %v42, %v105
      %107 = vmatmul.f32.gmra.mxu0 %v64
      %v108 = vpop.f32.mrf.mxu0
      %v109 = vadd.f32 %v42, %v108
      %110 = vmatmul.f32.gmra.mxu0 %v67
      %v111 = vpop.f32.mrf.mxu0
      %v112 = vadd.f32 %v42, %v111
      %113 = vdwg.mxu0
      %v114 = vmul.f32 %v91, 0.70710677
      %v115 = vmul.f32 %v94, 0.70710677
      %v116 = vmul.f32 %v97, 0.70710677
      %v117 = vmul.f32 %v100, 0.70710677
      %v118 = vmul.f32 %v103, 0.70710677
      %v119 = vmul.f32 %v106, 0.70710677
      %v120 = vmul.f32 %v109, 0.70710677
      %v121 = vmul.f32 %v112, 0.70710677
      %123 = vrot.lane.b32.xlu0 %v91, 124
      %v124 = vpop.permute.xlu0 %123
      %vm125 = vcmask 15360
      %v127 = vsel %vm125, %v114, 0
      %v129 = vsel %vm125, %v124, 0
      %131 = vmatpush.xpose.msra.mxu0 0.0
      %132 = vmatpush.xpose.msra.mxu0 0.0
      %133 = vmatpush.xpose.msra.mxu0 0.0
      %134 = vmatpush.xpose.msra.mxu0 0.0
      %135 = vmatpush.xpose.msra.mxu0 0.0
      %136 = vmatpush.xpose.msra.mxu0 0.0
      %137 = vmatpush.xpose.msra.mxu0 0.0
      %138 = vmatpush.xpose.msra.mxu0 0.0
      %139 = vmatpush.xpose.msra.mxu0 0.0
      %140 = vmatpush.xpose.msra.mxu0 0.0
      %141 = vmatpush.xpose.msra.mxu0 0.0
      %142 = vmatpush.xpose.msra.mxu0 0.0
      %143 = vmatpush.xpose.msra.mxu0 0.0
      %144 = vmatpush.xpose.msra.mxu0 0.0
      %145 = vmatpush.xpose.msra.mxu0 0.0
      %146 = vmatpush.xpose.msra.mxu0 %v129
      %147 = vmatmul.f32.gmra.mxu0 %v127
      %v148 = vpop.f32.mrf.mxu0
      %v149 = vadd.f32 0.0, %v148
      %150 = vdwg.mxu0
      %152 = vrot.lane.b32.xlu0 %v94, 124
      %v153 = vpop.permute.xlu0 %152
      %v155 = vsel %vm125, %v115, 0
      %v157 = vsel %vm125, %v153, 0
      %159 = vmatpush.xpose.msra.mxu0 0.0
      %160 = vmatpush.xpose.msra.mxu0 0.0
      %161 = vmatpush.xpose.msra.mxu0 0.0
      %162 = vmatpush.xpose.msra.mxu0 0.0
      %163 = vmatpush.xpose.msra.mxu0 0.0
      %164 = vmatpush.xpose.msra.mxu0 0.0
      %165 = vmatpush.xpose.msra.mxu0 0.0
      %166 = vmatpush.xpose.msra.mxu0 0.0
      %167 = vmatpush.xpose.msra.mxu0 0.0
      %168 = vmatpush.xpose.msra.mxu0 0.0
      %169 = vmatpush.xpose.msra.mxu0 0.0
      %170 = vmatpush.xpose.msra.mxu0 0.0
      %171 = vmatpush.xpose.msra.mxu0 0.0
      %172 = vmatpush.xpose.msra.mxu0 0.0
      %173 = vmatpush.xpose.msra.mxu0 0.0
      %174 = vmatpush.xpose.msra.mxu0 %v157
      %175 = vmatmul.f32.gmra.mxu0 %v155
      %v176 = vpop.f32.mrf.mxu0
      %v177 = vadd.f32 0.0, %v176
      %178 = vdwg.mxu0
      %180 = vrot.lane.b32.xlu0 %v97, 124
      %v181 = vpop.permute.xlu0 %180
      %v183 = vsel %vm125, %v116, 0
      %v185 = vsel %vm125, %v181, 0
      %187 = vmatpush.xpose.msra.mxu0 0.0
      %188 = vmatpush.xpose.msra.mxu0 0.0
      %189 = vmatpush.xpose.msra.mxu0 0.0
      %190 = vmatpush.xpose.msra.mxu0 0.0
      %191 = vmatpush.xpose.msra.mxu0 0.0
      %192 = vmatpush.xpose.msra.mxu0 0.0
      %193 = vmatpush.xpose.msra.mxu0 0.0
      %194 = vmatpush.xpose.msra.mxu0 0.0
      %195 = vmatpush.xpose.msra.mxu0 0.0
      %196 = vmatpush.xpose.msra.mxu0 0.0
      %197 = vmatpush.xpose.msra.mxu0 0.0
      %198 = vmatpush.xpose.msra.mxu0 0.0
      %199 = vmatpush.xpose.msra.mxu0 0.0
      %200 = vmatpush.xpose.msra.mxu0 0.0
      %201 = vmatpush.xpose.msra.mxu0 0.0
      %202 = vmatpush.xpose.msra.mxu0 %v185
      %203 = vmatmul.f32.gmra.mxu0 %v183
      %v204 = vpop.f32.mrf.mxu0
      %v205 = vadd.f32 0.0, %v204
      %206 = vdwg.mxu0
      %208 = vrot.lane.b32.xlu0 %v100, 124
      %v209 = vpop.permute.xlu0 %208
      %v211 = vsel %vm125, %v117, 0
      %v213 = vsel %vm125, %v209, 0
      %215 = vmatpush.xpose.msra.mxu0 0.0
      %216 = vmatpush.xpose.msra.mxu0 0.0
      %217 = vmatpush.xpose.msra.mxu0 0.0
      %218 = vmatpush.xpose.msra.mxu0 0.0
      %219 = vmatpush.xpose.msra.mxu0 0.0
      %220 = vmatpush.xpose.msra.mxu0 0.0
      %221 = vmatpush.xpose.msra.mxu0 0.0
      %222 = vmatpush.xpose.msra.mxu0 0.0
      %223 = vmatpush.xpose.msra.mxu0 0.0
      %224 = vmatpush.xpose.msra.mxu0 0.0
      %225 = vmatpush.xpose.msra.mxu0 0.0
      %226 = vmatpush.xpose.msra.mxu0 0.0
      %227 = vmatpush.xpose.msra.mxu0 0.0
      %228 = vmatpush.xpose.msra.mxu0 0.0
      %229 = vmatpush.xpose.msra.mxu0 0.0
      %230 = vmatpush.xpose.msra.mxu0 %v213
      %231 = vmatmul.f32.gmra.mxu0 %v211
      %v232 = vpop.f32.mrf.mxu0
      %v233 = vadd.f32 0.0, %v232
      %234 = vdwg.mxu0
      %236 = vrot.lane.b32.xlu0 %v103, 124
      %v237 = vpop.permute.xlu0 %236
      %v239 = vsel %vm125, %v118, 0
      %v241 = vsel %vm125, %v237, 0
      %243 = vmatpush.xpose.msra.mxu0 0.0
      %244 = vmatpush.xpose.msra.mxu0 0.0
      %245 = vmatpush.xpose.msra.mxu0 0.0
      %246 = vmatpush.xpose.msra.mxu0 0.0
      %247 = vmatpush.xpose.msra.mxu0 0.0
      %248 = vmatpush.xpose.msra.mxu0 0.0
      %249 = vmatpush.xpose.msra.mxu0 0.0
      %250 = vmatpush.xpose.msra.mxu0 0.0
      %251 = vmatpush.xpose.msra.mxu0 0.0
      %252 = vmatpush.xpose.msra.mxu0 0.0
      %253 = vmatpush.xpose.msra.mxu0 0.0
      %254 = vmatpush.xpose.msra.mxu0 0.0
      %255 = vmatpush.xpose.msra.mxu0 0.0
      %256 = vmatpush.xpose.msra.mxu0 0.0
      %257 = vmatpush.xpose.msra.mxu0 0.0
      %258 = vmatpush.xpose.msra.mxu0 %v241
      %259 = vmatmul.f32.gmra.mxu0 %v239
      %v260 = vpop.f32.mrf.mxu0
      %v261 = vadd.f32 0.0, %v260
      %262 = vdwg.mxu0
      %264 = vrot.lane.b32.xlu0 %v106, 124
      %v265 = vpop.permute.xlu0 %264
      %v267 = vsel %vm125, %v119, 0
      %v269 = vsel %vm125, %v265, 0
      %271 = vmatpush.xpose.msra.mxu0 0.0
      %272 = vmatpush.xpose.msra.mxu0 0.0
      %273 = vmatpush.xpose.msra.mxu0 0.0
      %274 = vmatpush.xpose.msra.mxu0 0.0
      %275 = vmatpush.xpose.msra.mxu0 0.0
      %276 = vmatpush.xpose.msra.mxu0 0.0
      %277 = vmatpush.xpose.msra.mxu0 0.0
      %278 = vmatpush.xpose.msra.mxu0 0.0
      %279 = vmatpush.xpose.msra.mxu0 0.0
      %280 = vmatpush.xpose.msra.mxu0 0.0
      %281 = vmatpush.xpose.msra.mxu0 0.0
      %282 = vmatpush.xpose.msra.mxu0 0.0
      %283 = vmatpush.xpose.msra.mxu0 0.0
      %284 = vmatpush.xpose.msra.mxu0 0.0
      %285 = vmatpush.xpose.msra.mxu0 0.0
      %286 = vmatpush.xpose.msra.mxu0 %v269
      %287 = vmatmul.f32.gmra.mxu0 %v267
      %v288 = vpop.f32.mrf.mxu0
      %v289 = vadd.f32 0.0, %v288
      %290 = vdwg.mxu0
      %292 = vrot.lane.b32.xlu0 %v109, 124
      %v293 = vpop.permute.xlu0 %292
      %v295 = vsel %vm125, %v120, 0
      %v297 = vsel %vm125, %v293, 0
      %299 = vmatpush.xpose.msra.mxu0 0.0
      %300 = vmatpush.xpose.msra.mxu0 0.0
      %301 = vmatpush.xpose.msra.mxu0 0.0
      %302 = vmatpush.xpose.msra.mxu0 0.0
      %303 = vmatpush.xpose.msra.mxu0 0.0
      %304 = vmatpush.xpose.msra.mxu0 0.0
      %305 = vmatpush.xpose.msra.mxu0 0.0
      %306 = vmatpush.xpose.msra.mxu0 0.0
      %307 = vmatpush.xpose.msra.mxu0 0.0
      %308 = vmatpush.xpose.msra.mxu0 0.0
      %309 = vmatpush.xpose.msra.mxu0 0.0
      %310 = vmatpush.xpose.msra.mxu0 0.0
      %311 = vmatpush.xpose.msra.mxu0 0.0
      %312 = vmatpush.xpose.msra.mxu0 0.0
      %313 = vmatpush.xpose.msra.mxu0 0.0
      %314 = vmatpush.xpose.msra.mxu0 %v297
      %315 = vmatmul.f32.gmra.mxu0 %v295
      %v316 = vpop.f32.mrf.mxu0
      %v317 = vadd.f32 0.0, %v316
      %318 = vdwg.mxu0
      %320 = vrot.lane.b32.xlu0 %v112, 124
      %v321 = vpop.permute.xlu0 %320
      %v323 = vsel %vm125, %v121, 0
      %v325 = vsel %vm125, %v321, 0
      %327 = vmatpush.xpose.msra.mxu0 0.0
      %328 = vmatpush.xpose.msra.mxu0 0.0
      %329 = vmatpush.xpose.msra.mxu0 0.0
      %330 = vmatpush.xpose.msra.mxu0 0.0
      %331 = vmatpush.xpose.msra.mxu0 0.0
      %332 = vmatpush.xpose.msra.mxu0 0.0
      %333 = vmatpush.xpose.msra.mxu0 0.0
      %334 = vmatpush.xpose.msra.mxu0 0.0
      %335 = vmatpush.xpose.msra.mxu0 0.0
      %336 = vmatpush.xpose.msra.mxu0 0.0
      %337 = vmatpush.xpose.msra.mxu0 0.0
      %338 = vmatpush.xpose.msra.mxu0 0.0
      %339 = vmatpush.xpose.msra.mxu0 0.0
      %340 = vmatpush.xpose.msra.mxu0 0.0
      %341 = vmatpush.xpose.msra.mxu0 0.0
      %342 = vmatpush.xpose.msra.mxu0 %v325
      %343 = vmatmul.f32.gmra.mxu0 %v323
      %v344 = vpop.f32.mrf.mxu0
      %v345 = vadd.f32 0.0, %v344
      %346 = vdwg.mxu0
      %vm347 = vcmask 64512
      %v348 = vsel %vm347, %v149, -inf
      %349 = vmax.xlane.f32.xlu0 %v348
      %v350 = vpop.xlane.xlu0 %349
      %v351 = vsel %vm347, %v177, -inf
      %352 = vmax.xlane.f32.xlu0 %v351
      %v353 = vpop.xlane.xlu0 %352
      %v354 = vsel %vm347, %v205, -inf
      %355 = vmax.xlane.f32.xlu0 %v354
      %v356 = vpop.xlane.xlu0 %355
      %v357 = vsel %vm347, %v233, -inf
      %358 = vmax.xlane.f32.xlu0 %v357
      %v359 = vpop.xlane.xlu0 %358
      %v360 = vsel %vm347, %v261, -inf
      %361 = vmax.xlane.f32.xlu0 %v360
      %v362 = vpop.xlane.xlu0 %361
      %v363 = vsel %vm347, %v289, -inf
      %364 = vmax.xlane.f32.xlu0 %v363
      %v365 = vpop.xlane.xlu0 %364
      %v366 = vsel %vm347, %v317, -inf
      %367 = vmax.xlane.f32.xlu0 %v366
      %v368 = vpop.xlane.xlu0 %367
      %v369 = vsel %vm347, %v345, -inf
      %370 = vmax.xlane.f32.xlu0 %v369
      %v371 = vpop.xlane.xlu0 %370
      %v372 = vsub.f32 %v149, %v350
      %v373 = vsub.f32 %v177, %v353
      %v374 = vsub.f32 %v205, %v356
      %v375 = vsub.f32 %v233, %v359
      %v376 = vsub.f32 %v261, %v362
      %v377 = vsub.f32 %v289, %v365
      %v378 = vsub.f32 %v317, %v368
      %v379 = vsub.f32 %v345, %v371
      %v380 = vmul.f32 %v372, 1.442695
      %v381 = vpow.pop %v380
      %v382 = vmul.f32 %v373, 1.442695
      %v383 = vpow.pop %v382
      %v384 = vmul.f32 %v374, 1.442695
      %v385 = vpow.pop %v384
      %v386 = vmul.f32 %v375, 1.442695
      %v387 = vpow.pop %v386
      %v388 = vmul.f32 %v376, 1.442695
      %v389 = vpow.pop %v388
      %v390 = vmul.f32 %v377, 1.442695
      %v391 = vpow.pop %v390
      %v392 = vmul.f32 %v378, 1.442695
      %v393 = vpow.pop %v392
      %v394 = vmul.f32 %v379, 1.442695
      %v395 = vpow.pop %v394
      %v396 = vsel %vm347, %v381, 0.0
      %397 = vadd.xlane.f32.xlu0 %v396
      %v398 = vpop.xlane.xlu0 %397
      %v399 = vsel %vm347, %v383, 0.0
      %400 = vadd.xlane.f32.xlu0 %v399
      %v401 = vpop.xlane.xlu0 %400
      %v402 = vsel %vm347, %v385, 0.0
      %403 = vadd.xlane.f32.xlu0 %v402
      %v404 = vpop.xlane.xlu0 %403
      %v405 = vsel %vm347, %v387, 0.0
      %406 = vadd.xlane.f32.xlu0 %v405
      %v407 = vpop.xlane.xlu0 %406
      %v408 = vsel %vm347, %v389, 0.0
      %409 = vadd.xlane.f32.xlu0 %v408
      %v410 = vpop.xlane.xlu0 %409
      %v411 = vsel %vm347, %v391, 0.0
      %412 = vadd.xlane.f32.xlu0 %v411
      %v413 = vpop.xlane.xlu0 %412
      %v414 = vsel %vm347, %v393, 0.0
      %415 = vadd.xlane.f32.xlu0 %v414
      %v416 = vpop.xlane.xlu0 %415
      %v417 = vsel %vm347, %v395, 0.0
      %418 = vadd.xlane.f32.xlu0 %v417
      %v419 = vpop.xlane.xlu0 %418
      %v420 = vrcp.pop %v398
      %v421 = vrcp.pop %v401
      %v422 = vrcp.pop %v404
      %v423 = vrcp.pop %v407
      %v424 = vrcp.pop %v410
      %v425 = vrcp.pop %v413
      %v426 = vrcp.pop %v416
      %v427 = vrcp.pop %v419
      %v428 = vmul.f32 %v381, %v420
      %v429 = vmul.f32 %v383, %v421
      %v430 = vmul.f32 %v385, %v422
      %v431 = vmul.f32 %v387, %v423
      %v432 = vmul.f32 %v389, %v424
      %v433 = vmul.f32 %v391, %v425
      %v434 = vmul.f32 %v393, %v426
      %v435 = vmul.f32 %v395, %v427
      %436 = vrot.lane.b32.xlu0 %v91, 120
      %v437 = vpop.permute.xlu0 %436
      %v440 = vsel %vm347, %v428, 0
      %442 = vmatpush.msra.mxu0 0.0
      %443 = vmatpush.msra.mxu0 0.0
      %444 = vmatpush.msra.mxu0 0.0
      %445 = vmatpush.msra.mxu0 0.0
      %446 = vmatpush.msra.mxu0 0.0
      %447 = vmatpush.msra.mxu0 0.0
      %448 = vmatpush.msra.mxu0 0.0
      %449 = vmatpush.msra.mxu0 0.0
      %450 = vmatpush.msra.mxu0 0.0
      %451 = vmatpush.msra.mxu0 0.0
      %452 = vmatpush.msra.mxu0 0.0
      %453 = vmatpush.msra.mxu0 0.0
      %454 = vmatpush.msra.mxu0 0.0
      %455 = vmatpush.msra.mxu0 0.0
      %456 = vmatpush.msra.mxu0 0.0
      %457 = vmatpush.msra.mxu0 %v437
      %458 = vmatmul.f32.gmra.mxu0 %v440
      %v459 = vpop.f32.mrf.mxu0
      %v460 = vadd.f32 0.0, %v459
      %461 = vdwg.mxu0
      %462 = vrot.lane.b32.xlu0 %v94, 120
      %v463 = vpop.permute.xlu0 %462
      %v466 = vsel %vm347, %v429, 0
      %468 = vmatpush.msra.mxu0 0.0
      %469 = vmatpush.msra.mxu0 0.0
      %470 = vmatpush.msra.mxu0 0.0
      %471 = vmatpush.msra.mxu0 0.0
      %472 = vmatpush.msra.mxu0 0.0
      %473 = vmatpush.msra.mxu0 0.0
      %474 = vmatpush.msra.mxu0 0.0
      %475 = vmatpush.msra.mxu0 0.0
      %476 = vmatpush.msra.mxu0 0.0
      %477 = vmatpush.msra.mxu0 0.0
      %478 = vmatpush.msra.mxu0 0.0
      %479 = vmatpush.msra.mxu0 0.0
      %480 = vmatpush.msra.mxu0 0.0
      %481 = vmatpush.msra.mxu0 0.0
      %482 = vmatpush.msra.mxu0 0.0
      %483 = vmatpush.msra.mxu0 %v463
      %484 = vmatmul.f32.gmra.mxu0 %v466
      %v485 = vpop.f32.mrf.mxu0
      %v486 = vadd.f32 0.0, %v485
      %487 = vdwg.mxu0
      %488 = vrot.lane.b32.xlu0 %v97, 120
      %v489 = vpop.permute.xlu0 %488
      %v492 = vsel %vm347, %v430, 0
      %494 = vmatpush.msra.mxu0 0.0
      %495 = vmatpush.msra.mxu0 0.0
      %496 = vmatpush.msra.mxu0 0.0
      %497 = vmatpush.msra.mxu0 0.0
      %498 = vmatpush.msra.mxu0 0.0
      %499 = vmatpush.msra.mxu0 0.0
      %500 = vmatpush.msra.mxu0 0.0
      %501 = vmatpush.msra.mxu0 0.0
      %502 = vmatpush.msra.mxu0 0.0
      %503 = vmatpush.msra.mxu0 0.0
      %504 = vmatpush.msra.mxu0 0.0
      %505 = vmatpush.msra.mxu0 0.0
      %506 = vmatpush.msra.mxu0 0.0
      %507 = vmatpush.msra.mxu0 0.0
      %508 = vmatpush.msra.mxu0 0.0
      %509 = vmatpush.msra.mxu0 %v489
      %510 = vmatmul.f32.gmra.mxu0 %v492
      %v511 = vpop.f32.mrf.mxu0
      %v512 = vadd.f32 0.0, %v511
      %513 = vdwg.mxu0
      %514 = vrot.lane.b32.xlu0 %v100, 120
      %v515 = vpop.permute.xlu0 %514
      %v518 = vsel %vm347, %v431, 0
      %520 = vmatpush.msra.mxu0 0.0
      %521 = vmatpush.msra.mxu0 0.0
      %522 = vmatpush.msra.mxu0 0.0
      %523 = vmatpush.msra.mxu0 0.0
      %524 = vmatpush.msra.mxu0 0.0
      %525 = vmatpush.msra.mxu0 0.0
      %526 = vmatpush.msra.mxu0 0.0
      %527 = vmatpush.msra.mxu0 0.0
      %528 = vmatpush.msra.mxu0 0.0
      %529 = vmatpush.msra.mxu0 0.0
      %530 = vmatpush.msra.mxu0 0.0
      %531 = vmatpush.msra.mxu0 0.0
      %532 = vmatpush.msra.mxu0 0.0
      %533 = vmatpush.msra.mxu0 0.0
      %534 = vmatpush.msra.mxu0 0.0
      %535 = vmatpush.msra.mxu0 %v515
      %536 = vmatmul.f32.gmra.mxu0 %v518
      %v537 = vpop.f32.mrf.mxu0
      %v538 = vadd.f32 0.0, %v537
      %539 = vdwg.mxu0
      %540 = vrot.lane.b32.xlu0 %v103, 120
      %v541 = vpop.permute.xlu0 %540
      %v544 = vsel %vm347, %v432, 0
      %546 = vmatpush.msra.mxu0 0.0
      %547 = vmatpush.msra.mxu0 0.0
      %548 = vmatpush.msra.mxu0 0.0
      %549 = vmatpush.msra.mxu0 0.0
      %550 = vmatpush.msra.mxu0 0.0
      %551 = vmatpush.msra.mxu0 0.0
      %552 = vmatpush.msra.mxu0 0.0
      %553 = vmatpush.msra.mxu0 0.0
      %554 = vmatpush.msra.mxu0 0.0
      %555 = vmatpush.msra.mxu0 0.0
      %556 = vmatpush.msra.mxu0 0.0
      %557 = vmatpush.msra.mxu0 0.0
      %558 = vmatpush.msra.mxu0 0.0
      %559 = vmatpush.msra.mxu0 0.0
      %560 = vmatpush.msra.mxu0 0.0
      %561 = vmatpush.msra.mxu0 %v541
      %562 = vmatmul.f32.gmra.mxu0 %v544
      %v563 = vpop.f32.mrf.mxu0
      %v564 = vadd.f32 0.0, %v563
      %565 = vdwg.mxu0
      %566 = vrot.lane.b32.xlu0 %v106, 120
      %v567 = vpop.permute.xlu0 %566
      %v570 = vsel %vm347, %v433, 0
      %572 = vmatpush.msra.mxu0 0.0
      %573 = vmatpush.msra.mxu0 0.0
      %574 = vmatpush.msra.mxu0 0.0
      %575 = vmatpush.msra.mxu0 0.0
      %576 = vmatpush.msra.mxu0 0.0
      %577 = vmatpush.msra.mxu0 0.0
      %578 = vmatpush.msra.mxu0 0.0
      %579 = vmatpush.msra.mxu0 0.0
      %580 = vmatpush.msra.mxu0 0.0
      %581 = vmatpush.msra.mxu0 0.0
      %582 = vmatpush.msra.mxu0 0.0
      %583 = vmatpush.msra.mxu0 0.0
      %584 = vmatpush.msra.mxu0 0.0
      %585 = vmatpush.msra.mxu0 0.0
      %586 = vmatpush.msra.mxu0 0.0
      %587 = vmatpush.msra.mxu0 %v567
      %588 = vmatmul.f32.gmra.mxu0 %v570
      %v589 = vpop.f32.mrf.mxu0
      %v590 = vadd.f32 0.0, %v589
      %591 = vdwg.mxu0
      %592 = vrot.lane.b32.xlu0 %v109, 120
      %v593 = vpop.permute.xlu0 %592
      %v596 = vsel %vm347, %v434, 0
      %598 = vmatpush.msra.mxu0 0.0
      %599 = vmatpush.msra.mxu0 0.0
      %600 = vmatpush.msra.mxu0 0.0
      %601 = vmatpush.msra.mxu0 0.0
      %602 = vmatpush.msra.mxu0 0.0
      %603 = vmatpush.msra.mxu0 0.0
      %604 = vmatpush.msra.mxu0 0.0
      %605 = vmatpush.msra.mxu0 0.0
      %606 = vmatpush.msra.mxu0 0.0
      %607 = vmatpush.msra.mxu0 0.0
      %608 = vmatpush.msra.mxu0 0.0
      %609 = vmatpush.msra.mxu0 0.0
      %610 = vmatpush.msra.mxu0 0.0
      %611 = vmatpush.msra.mxu0 0.0
      %612 = vmatpush.msra.mxu0 0.0
      %613 = vmatpush.msra.mxu0 %v593
      %614 = vmatmul.f32.gmra.mxu0 %v596
      %v615 = vpop.f32.mrf.mxu0
      %v616 = vadd.f32 0.0, %v615
      %617 = vdwg.mxu0
      %618 = vrot.lane.b32.xlu0 %v112, 120
      %v619 = vpop.permute.xlu0 %618
      %v622 = vsel %vm347, %v435, 0
      %624 = vmatpush.msra.mxu0 0.0
      %625 = vmatpush.msra.mxu0 0.0
      %626 = vmatpush.msra.mxu0 0.0
      %627 = vmatpush.msra.mxu0 0.0
      %628 = vmatpush.msra.mxu0 0.0
      %629 = vmatpush.msra.mxu0 0.0
      %630 = vmatpush.msra.mxu0 0.0
      %631 = vmatpush.msra.mxu0 0.0
      %632 = vmatpush.msra.mxu0 0.0
      %633 = vmatpush.msra.mxu0 0.0
      %634 = vmatpush.msra.mxu0 0.0
      %635 = vmatpush.msra.mxu0 0.0
      %636 = vmatpush.msra.mxu0 0.0
      %637 = vmatpush.msra.mxu0 0.0
      %638 = vmatpush.msra.mxu0 0.0
      %639 = vmatpush.msra.mxu0 %v619
      %640 = vmatmul.f32.gmra.mxu0 %v622
      %v641 = vpop.f32.mrf.mxu0
      %v642 = vadd.f32 0.0, %v641
      %643 = vdwg.mxu0
      %644 = vst.msk [vmem:[#allocation2] sm:$0xff] %vm125, %v460
      %645 = vst.msk [vmem:[#allocation2 + $0x8] sm:$0xff] %vm125, %v486
      %646 = vst.msk [vmem:[#allocation2 + $0x10] sm:$0xff] %vm125, %v512
      %647 = vst.msk [vmem:[#allocation2 + $0x18] sm:$0xff] %vm125, %v538
      %648 = vst.msk [vmem:[#allocation2 + $0x20] sm:$0xff] %vm125, %v564
      %649 = vst.msk [vmem:[#allocation2 + $0x28] sm:$0xff] %vm125, %v590
      %650 = vst.msk [vmem:[#allocation2 + $0x30] sm:$0xff] %vm125, %v616
      %651 = vst.msk [vmem:[#allocation2 + $0x38] sm:$0xff] %vm125, %v642
      %652 = vrot.lane.b32.xlu0 %v114, 126
      %v653 = vpop.permute.xlu0 %652
      %654 = vrot.lane.b32.xlu0 %v91, 122
      %v655 = vpop.permute.xlu0 %654
      %v656 = vsel %vm125, %v653, 0
      %v658 = vsel %vm125, %v655, 0
      %660 = vmatpush.xpose.msra.mxu0 0.0
      %661 = vmatpush.xpose.msra.mxu0 0.0
      %662 = vmatpush.xpose.msra.mxu0 0.0
      %663 = vmatpush.xpose.msra.mxu0 0.0
      %664 = vmatpush.xpose.msra.mxu0 0.0
      %665 = vmatpush.xpose.msra.mxu0 0.0
      %666 = vmatpush.xpose.msra.mxu0 0.0
      %667 = vmatpush.xpose.msra.mxu0 0.0
      %668 = vmatpush.xpose.msra.mxu0 0.0
      %669 = vmatpush.xpose.msra.mxu0 0.0
      %670 = vmatpush.xpose.msra.mxu0 0.0
      %671 = vmatpush.xpose.msra.mxu0 0.0
      %672 = vmatpush.xpose.msra.mxu0 0.0
      %673 = vmatpush.xpose.msra.mxu0 0.0
      %674 = vmatpush.xpose.msra.mxu0 0.0
      %675 = vmatpush.xpose.msra.mxu0 %v658
      %676 = vmatmul.f32.gmra.mxu0 %v656
      %v677 = vpop.f32.mrf.mxu0
      %v678 = vadd.f32 0.0, %v677
      %679 = vdwg.mxu0
      %680 = vrot.lane.b32.xlu0 %v115, 126
      %v681 = vpop.permute.xlu0 %680
      %682 = vrot.lane.b32.xlu0 %v94, 122
      %v683 = vpop.permute.xlu0 %682
      %v684 = vsel %vm125, %v681, 0
      %v686 = vsel %vm125, %v683, 0
      %688 = vmatpush.xpose.msra.mxu0 0.0
      %689 = vmatpush.xpose.msra.mxu0 0.0
      %690 = vmatpush.xpose.msra.mxu0 0.0
      %691 = vmatpush.xpose.msra.mxu0 0.0
      %692 = vmatpush.xpose.msra.mxu0 0.0
      %693 = vmatpush.xpose.msra.mxu0 0.0
      %694 = vmatpush.xpose.msra.mxu0 0.0
      %695 = vmatpush.xpose.msra.mxu0 0.0
      %696 = vmatpush.xpose.msra.mxu0 0.0
      %697 = vmatpush.xpose.msra.mxu0 0.0
      %698 = vmatpush.xpose.msra.mxu0 0.0
      %699 = vmatpush.xpose.msra.mxu0 0.0
      %700 = vmatpush.xpose.msra.mxu0 0.0
      %701 = vmatpush.xpose.msra.mxu0 0.0
      %702 = vmatpush.xpose.msra.mxu0 0.0
      %703 = vmatpush.xpose.msra.mxu0 %v686
      %704 = vmatmul.f32.gmra.mxu0 %v684
      %v705 = vpop.f32.mrf.mxu0
      %v706 = vadd.f32 0.0, %v705
      %707 = vdwg.mxu0
      %708 = vrot.lane.b32.xlu0 %v116, 126
      %v709 = vpop.permute.xlu0 %708
      %710 = vrot.lane.b32.xlu0 %v97, 122
      %v711 = vpop.permute.xlu0 %710
      %v712 = vsel %vm125, %v709, 0
      %v714 = vsel %vm125, %v711, 0
      %716 = vmatpush.xpose.msra.mxu0 0.0
      %717 = vmatpush.xpose.msra.mxu0 0.0
      %718 = vmatpush.xpose.msra.mxu0 0.0
      %719 = vmatpush.xpose.msra.mxu0 0.0
      %720 = vmatpush.xpose.msra.mxu0 0.0
      %721 = vmatpush.xpose.msra.mxu0 0.0
      %722 = vmatpush.xpose.msra.mxu0 0.0
      %723 = vmatpush.xpose.msra.mxu0 0.0
      %724 = vmatpush.xpose.msra.mxu0 0.0
      %725 = vmatpush.xpose.msra.mxu0 0.0
      %726 = vmatpush.xpose.msra.mxu0 0.0
      %727 = vmatpush.xpose.msra.mxu0 0.0
      %728 = vmatpush.xpose.msra.mxu0 0.0
      %729 = vmatpush.xpose.msra.mxu0 0.0
      %730 = vmatpush.xpose.msra.mxu0 0.0
      %731 = vmatpush.xpose.msra.mxu0 %v714
      %732 = vmatmul.f32.gmra.mxu0 %v712
      %v733 = vpop.f32.mrf.mxu0
      %v734 = vadd.f32 0.0, %v733
      %735 = vdwg.mxu0
      %736 = vrot.lane.b32.xlu0 %v117, 126
      %v737 = vpop.permute.xlu0 %736
      %738 = vrot.lane.b32.xlu0 %v100, 122
      %v739 = vpop.permute.xlu0 %738
      %v740 = vsel %vm125, %v737, 0
      %v742 = vsel %vm125, %v739, 0
      %744 = vmatpush.xpose.msra.mxu0 0.0
      %745 = vmatpush.xpose.msra.mxu0 0.0
      %746 = vmatpush.xpose.msra.mxu0 0.0
      %747 = vmatpush.xpose.msra.mxu0 0.0
      %748 = vmatpush.xpose.msra.mxu0 0.0
      %749 = vmatpush.xpose.msra.mxu0 0.0
      %750 = vmatpush.xpose.msra.mxu0 0.0
      %751 = vmatpush.xpose.msra.mxu0 0.0
      %752 = vmatpush.xpose.msra.mxu0 0.0
      %753 = vmatpush.xpose.msra.mxu0 0.0
      %754 = vmatpush.xpose.msra.mxu0 0.0
      %755 = vmatpush.xpose.msra.mxu0 0.0
      %756 = vmatpush.xpose.msra.mxu0 0.0
      %757 = vmatpush.xpose.msra.mxu0 0.0
      %758 = vmatpush.xpose.msra.mxu0 0.0
      %759 = vmatpush.xpose.msra.mxu0 %v742
      %760 = vmatmul.f32.gmra.mxu0 %v740
      %v761 = vpop.f32.mrf.mxu0
      %v762 = vadd.f32 0.0, %v761
      %763 = vdwg.mxu0
      %764 = vrot.lane.b32.xlu0 %v118, 126
      %v765 = vpop.permute.xlu0 %764
      %766 = vrot.lane.b32.xlu0 %v103, 122
      %v767 = vpop.permute.xlu0 %766
      %v768 = vsel %vm125, %v765, 0
      %v770 = vsel %vm125, %v767, 0
      %772 = vmatpush.xpose.msra.mxu0 0.0
      %773 = vmatpush.xpose.msra.mxu0 0.0
      %774 = vmatpush.xpose.msra.mxu0 0.0
      %775 = vmatpush.xpose.msra.mxu0 0.0
      %776 = vmatpush.xpose.msra.mxu0 0.0
      %777 = vmatpush.xpose.msra.mxu0 0.0
      %778 = vmatpush.xpose.msra.mxu0 0.0
      %779 = vmatpush.xpose.msra.mxu0 0.0
      %780 = vmatpush.xpose.msra.mxu0 0.0
      %781 = vmatpush.xpose.msra.mxu0 0.0
      %782 = vmatpush.xpose.msra.mxu0 0.0
      %783 = vmatpush.xpose.msra.mxu0 0.0
      %784 = vmatpush.xpose.msra.mxu0 0.0
      %785 = vmatpush.xpose.msra.mxu0 0.0
      %786 = vmatpush.xpose.msra.mxu0 0.0
      %787 = vmatpush.xpose.msra.mxu0 %v770
      %788 = vmatmul.f32.gmra.mxu0 %v768
      %v789 = vpop.f32.mrf.mxu0
      %v790 = vadd.f32 0.0, %v789
      %791 = vdwg.mxu0
      %792 = vrot.lane.b32.xlu0 %v119, 126
      %v793 = vpop.permute.xlu0 %792
      %794 = vrot.lane.b32.xlu0 %v106, 122
      %v795 = vpop.permute.xlu0 %794
      %v796 = vsel %vm125, %v793, 0
      %v798 = vsel %vm125, %v795, 0
      %800 = vmatpush.xpose.msra.mxu0 0.0
      %801 = vmatpush.xpose.msra.mxu0 0.0
      %802 = vmatpush.xpose.msra.mxu0 0.0
      %803 = vmatpush.xpose.msra.mxu0 0.0
      %804 = vmatpush.xpose.msra.mxu0 0.0
      %805 = vmatpush.xpose.msra.mxu0 0.0
      %806 = vmatpush.xpose.msra.mxu0 0.0
      %807 = vmatpush.xpose.msra.mxu0 0.0
      %808 = vmatpush.xpose.msra.mxu0 0.0
      %809 = vmatpush.xpose.msra.mxu0 0.0
      %810 = vmatpush.xpose.msra.mxu0 0.0
      %811 = vmatpush.xpose.msra.mxu0 0.0
      %812 = vmatpush.xpose.msra.mxu0 0.0
      %813 = vmatpush.xpose.msra.mxu0 0.0
      %814 = vmatpush.xpose.msra.mxu0 0.0
      %815 = vmatpush.xpose.msra.mxu0 %v798
      %816 = vmatmul.f32.gmra.mxu0 %v796
      %v817 = vpop.f32.mrf.mxu0
      %v818 = vadd.f32 0.0, %v817
      %819 = vdwg.mxu0
      %820 = vrot.lane.b32.xlu0 %v120, 126
      %v821 = vpop.permute.xlu0 %820
      %822 = vrot.lane.b32.xlu0 %v109, 122
      %v823 = vpop.permute.xlu0 %822
      %v824 = vsel %vm125, %v821, 0
      %v826 = vsel %vm125, %v823, 0
      %828 = vmatpush.xpose.msra.mxu0 0.0
      %829 = vmatpush.xpose.msra.mxu0 0.0
      %830 = vmatpush.xpose.msra.mxu0 0.0
      %831 = vmatpush.xpose.msra.mxu0 0.0
      %832 = vmatpush.xpose.msra.mxu0 0.0
      %833 = vmatpush.xpose.msra.mxu0 0.0
      %834 = vmatpush.xpose.msra.mxu0 0.0
      %835 = vmatpush.xpose.msra.mxu0 0.0
      %836 = vmatpush.xpose.msra.mxu0 0.0
      %837 = vmatpush.xpose.msra.mxu0 0.0
      %838 = vmatpush.xpose.msra.mxu0 0.0
      %839 = vmatpush.xpose.msra.mxu0 0.0
      %840 = vmatpush.xpose.msra.mxu0 0.0
      %841 = vmatpush.xpose.msra.mxu0 0.0
      %842 = vmatpush.xpose.msra.mxu0 0.0
      %843 = vmatpush.xpose.msra.mxu0 %v826
      %844 = vmatmul.f32.gmra.mxu0 %v824
      %v845 = vpop.f32.mrf.mxu0
      %v846 = vadd.f32 0.0, %v845
      %847 = vdwg.mxu0
      %848 = vrot.lane.b32.xlu0 %v121, 126
      %v849 = vpop.permute.xlu0 %848
      %850 = vrot.lane.b32.xlu0 %v112, 122
      %v851 = vpop.permute.xlu0 %850
      %v852 = vsel %vm125, %v849, 0
      %v854 = vsel %vm125, %v851, 0
      %856 = vmatpush.xpose.msra.mxu0 0.0
      %857 = vmatpush.xpose.msra.mxu0 0.0
      %858 = vmatpush.xpose.msra.mxu0 0.0
      %859 = vmatpush.xpose.msra.mxu0 0.0
      %860 = vmatpush.xpose.msra.mxu0 0.0
      %861 = vmatpush.xpose.msra.mxu0 0.0
      %862 = vmatpush.xpose.msra.mxu0 0.0
      %863 = vmatpush.xpose.msra.mxu0 0.0
      %864 = vmatpush.xpose.msra.mxu0 0.0
      %865 = vmatpush.xpose.msra.mxu0 0.0
      %866 = vmatpush.xpose.msra.mxu0 0.0
      %867 = vmatpush.xpose.msra.mxu0 0.0
      %868 = vmatpush.xpose.msra.mxu0 0.0
      %869 = vmatpush.xpose.msra.mxu0 0.0
      %870 = vmatpush.xpose.msra.mxu0 0.0
      %871 = vmatpush.xpose.msra.mxu0 %v854
      %872 = vmatmul.f32.gmra.mxu0 %v852
      %v873 = vpop.f32.mrf.mxu0
      %v874 = vadd.f32 0.0, %v873
      %875 = vdwg.mxu0
      %v876 = vsel %vm347, %v678, -inf
      %877 = vmax.xlane.f32.xlu0 %v876
      %v878 = vpop.xlane.xlu0 %877
      %v879 = vsel %vm347, %v706, -inf
      %880 = vmax.xlane.f32.xlu0 %v879
      %v881 = vpop.xlane.xlu0 %880
      %v882 = vsel %vm347, %v734, -inf
      %883 = vmax.xlane.f32.xlu0 %v882
      %v884 = vpop.xlane.xlu0 %883
      %v885 = vsel %vm347, %v762, -inf
      %886 = vmax.xlane.f32.xlu0 %v885
      %v887 = vpop.xlane.xlu0 %886
      %v888 = vsel %vm347, %v790, -inf
      %889 = vmax.xlane.f32.xlu0 %v888
      %v890 = vpop.xlane.xlu0 %889
      %v891 = vsel %vm347, %v818, -inf
      %892 = vmax.xlane.f32.xlu0 %v891
      %v893 = vpop.xlane.xlu0 %892
      %v894 = vsel %vm347, %v846, -inf
      %895 = vmax.xlane.f32.xlu0 %v894
      %v896 = vpop.xlane.xlu0 %895
      %v897 = vsel %vm347, %v874, -inf
      %898 = vmax.xlane.f32.xlu0 %v897
      %v899 = vpop.xlane.xlu0 %898
      %v900 = vsub.f32 %v678, %v878
      %v901 = vsub.f32 %v706, %v881
      %v902 = vsub.f32 %v734, %v884
      %v903 = vsub.f32 %v762, %v887
      %v904 = vsub.f32 %v790, %v890
      %v905 = vsub.f32 %v818, %v893
      %v906 = vsub.f32 %v846, %v896
      %v907 = vsub.f32 %v874, %v899
      %v908 = vmul.f32 %v900, 1.442695
      %v909 = vpow.pop %v908
      %v910 = vmul.f32 %v901, 1.442695
      %v911 = vpow.pop %v910
      %v912 = vmul.f32 %v902, 1.442695
      %v913 = vpow.pop %v912
      %v914 = vmul.f32 %v903, 1.442695
      %v915 = vpow.pop %v914
      %v916 = vmul.f32 %v904, 1.442695
      %v917 = vpow.pop %v916
      %v918 = vmul.f32 %v905, 1.442695
      %v919 = vpow.pop %v918
      %v920 = vmul.f32 %v906, 1.442695
      %v921 = vpow.pop %v920
      %v922 = vmul.f32 %v907, 1.442695
      %v923 = vpow.pop %v922
      %v924 = vsel %vm347, %v909, 0.0
      %925 = vadd.xlane.f32.xlu0 %v924
      %v926 = vpop.xlane.xlu0 %925
      %v927 = vsel %vm347, %v911, 0.0
      %928 = vadd.xlane.f32.xlu0 %v927
      %v929 = vpop.xlane.xlu0 %928
      %v930 = vsel %vm347, %v913, 0.0
      %931 = vadd.xlane.f32.xlu0 %v930
      %v932 = vpop.xlane.xlu0 %931
      %v933 = vsel %vm347, %v915, 0.0
      %934 = vadd.xlane.f32.xlu0 %v933
      %v935 = vpop.xlane.xlu0 %934
      %v936 = vsel %vm347, %v917, 0.0
      %937 = vadd.xlane.f32.xlu0 %v936
      %v938 = vpop.xlane.xlu0 %937
      %v939 = vsel %vm347, %v919, 0.0
      %940 = vadd.xlane.f32.xlu0 %v939
      %v941 = vpop.xlane.xlu0 %940
      %v942 = vsel %vm347, %v921, 0.0
      %943 = vadd.xlane.f32.xlu0 %v942
      %v944 = vpop.xlane.xlu0 %943
      %v945 = vsel %vm347, %v923, 0.0
      %946 = vadd.xlane.f32.xlu0 %v945
      %v947 = vpop.xlane.xlu0 %946
      %v948 = vrcp.pop %v926
      %v949 = vrcp.pop %v929
      %v950 = vrcp.pop %v932
      %v951 = vrcp.pop %v935
      %v952 = vrcp.pop %v938
      %v953 = vrcp.pop %v941
      %v954 = vrcp.pop %v944
      %v955 = vrcp.pop %v947
      %v956 = vmul.f32 %v909, %v948
      %v957 = vmul.f32 %v911, %v949
      %v958 = vmul.f32 %v913, %v950
      %v959 = vmul.f32 %v915, %v951
      %v960 = vmul.f32 %v917, %v952
      %v961 = vmul.f32 %v919, %v953
      %v962 = vmul.f32 %v921, %v954
      %v963 = vmul.f32 %v923, %v955
      %964 = vrot.lane.b32.xlu0 %v91, 118
      %v965 = vpop.permute.xlu0 %964
      %v968 = vsel %vm347, %v956, 0
      %970 = vmatpush.msra.mxu0 0.0
      %971 = vmatpush.msra.mxu0 0.0
      %972 = vmatpush.msra.mxu0 0.0
      %973 = vmatpush.msra.mxu0 0.0
      %974 = vmatpush.msra.mxu0 0.0
      %975 = vmatpush.msra.mxu0 0.0
      %976 = vmatpush.msra.mxu0 0.0
      %977 = vmatpush.msra.mxu0 0.0
      %978 = vmatpush.msra.mxu0 0.0
      %979 = vmatpush.msra.mxu0 0.0
      %980 = vmatpush.msra.mxu0 0.0
      %981 = vmatpush.msra.mxu0 0.0
      %982 = vmatpush.msra.mxu0 0.0
      %983 = vmatpush.msra.mxu0 0.0
      %984 = vmatpush.msra.mxu0 0.0
      %985 = vmatpush.msra.mxu0 %v965
      %986 = vmatmul.f32.gmra.mxu0 %v968
      %v987 = vpop.f32.mrf.mxu0
      %v988 = vadd.f32 0.0, %v987
      %989 = vdwg.mxu0
      %990 = vrot.lane.b32.xlu0 %v94, 118
      %v991 = vpop.permute.xlu0 %990
      %v994 = vsel %vm347, %v957, 0
      %996 = vmatpush.msra.mxu0 0.0
      %997 = vmatpush.msra.mxu0 0.0
      %998 = vmatpush.msra.mxu0 0.0
      %999 = vmatpush.msra.mxu0 0.0
      %1000 = vmatpush.msra.mxu0 0.0
      %1001 = vmatpush.msra.mxu0 0.0
      %1002 = vmatpush.msra.mxu0 0.0
      %1003 = vmatpush.msra.mxu0 0.0
      %1004 = vmatpush.msra.mxu0 0.0
      %1005 = vmatpush.msra.mxu0 0.0
      %1006 = vmatpush.msra.mxu0 0.0
      %1007 = vmatpush.msra.mxu0 0.0
      %1008 = vmatpush.msra.mxu0 0.0
      %1009 = vmatpush.msra.mxu0 0.0
      %1010 = vmatpush.msra.mxu0 0.0
      %1011 = vmatpush.msra.mxu0 %v991
      %1012 = vmatmul.f32.gmra.mxu0 %v994
      %v1013 = vpop.f32.mrf.mxu0
      %v1014 = vadd.f32 0.0, %v1013
      %1015 = vdwg.mxu0
      %1016 = vrot.lane.b32.xlu0 %v97, 118
      %v1017 = vpop.permute.xlu0 %1016
      %v1020 = vsel %vm347, %v958, 0
      %1022 = vmatpush.msra.mxu0 0.0
      %1023 = vmatpush.msra.mxu0 0.0
      %1024 = vmatpush.msra.mxu0 0.0
      %1025 = vmatpush.msra.mxu0 0.0
      %1026 = vmatpush.msra.mxu0 0.0
      %1027 = vmatpush.msra.mxu0 0.0
      %1028 = vmatpush.msra.mxu0 0.0
      %1029 = vmatpush.msra.mxu0 0.0
      %1030 = vmatpush.msra.mxu0 0.0
      %1031 = vmatpush.msra.mxu0 0.0
      %1032 = vmatpush.msra.mxu0 0.0
      %1033 = vmatpush.msra.mxu0 0.0
      %1034 = vmatpush.msra.mxu0 0.0
      %1035 = vmatpush.msra.mxu0 0.0
      %1036 = vmatpush.msra.mxu0 0.0
      %1037 = vmatpush.msra.mxu0 %v1017
      %1038 = vmatmul.f32.gmra.mxu0 %v1020
      %v1039 = vpop.f32.mrf.mxu0
      %v1040 = vadd.f32 0.0, %v1039
      %1041 = vdwg.mxu0
      %1042 = vrot.lane.b32.xlu0 %v100, 118
      %v1043 = vpop.permute.xlu0 %1042
      %v1046 = vsel %vm347, %v959, 0
      %1048 = vmatpush.msra.mxu0 0.0
      %1049 = vmatpush.msra.mxu0 0.0
      %1050 = vmatpush.msra.mxu0 0.0
      %1051 = vmatpush.msra.mxu0 0.0
      %1052 = vmatpush.msra.mxu0 0.0
      %1053 = vmatpush.msra.mxu0 0.0
      %1054 = vmatpush.msra.mxu0 0.0
      %1055 = vmatpush.msra.mxu0 0.0
      %1056 = vmatpush.msra.mxu0 0.0
      %1057 = vmatpush.msra.mxu0 0.0
      %1058 = vmatpush.msra.mxu0 0.0
      %1059 = vmatpush.msra.mxu0 0.0
      %1060 = vmatpush.msra.mxu0 0.0
      %1061 = vmatpush.msra.mxu0 0.0
      %1062 = vmatpush.msra.mxu0 0.0
      %1063 = vmatpush.msra.mxu0 %v1043
      %1064 = vmatmul.f32.gmra.mxu0 %v1046
      %v1065 = vpop.f32.mrf.mxu0
      %v1066 = vadd.f32 0.0, %v1065
      %1067 = vdwg.mxu0
      %1068 = vrot.lane.b32.xlu0 %v103, 118
      %v1069 = vpop.permute.xlu0 %1068
      %v1072 = vsel %vm347, %v960, 0
      %1074 = vmatpush.msra.mxu0 0.0
      %1075 = vmatpush.msra.mxu0 0.0
      %1076 = vmatpush.msra.mxu0 0.0
      %1077 = vmatpush.msra.mxu0 0.0
      %1078 = vmatpush.msra.mxu0 0.0
      %1079 = vmatpush.msra.mxu0 0.0
      %1080 = vmatpush.msra.mxu0 0.0
      %1081 = vmatpush.msra.mxu0 0.0
      %1082 = vmatpush.msra.mxu0 0.0
      %1083 = vmatpush.msra.mxu0 0.0
      %1084 = vmatpush.msra.mxu0 0.0
      %1085 = vmatpush.msra.mxu0 0.0
      %1086 = vmatpush.msra.mxu0 0.0
      %1087 = vmatpush.msra.mxu0 0.0
      %1088 = vmatpush.msra.mxu0 0.0
      %1089 = vmatpush.msra.mxu0 %v1069
      %1090 = vmatmul.f32.gmra.mxu0 %v1072
      %v1091 = vpop.f32.mrf.mxu0
      %v1092 = vadd.f32 0.0, %v1091
      %1093 = vdwg.mxu0
      %1094 = vrot.lane.b32.xlu0 %v106, 118
      %v1095 = vpop.permute.xlu0 %1094
      %v1098 = vsel %vm347, %v961, 0
      %1100 = vmatpush.msra.mxu0 0.0
      %1101 = vmatpush.msra.mxu0 0.0
      %1102 = vmatpush.msra.mxu0 0.0
      %1103 = vmatpush.msra.mxu0 0.0
      %1104 = vmatpush.msra.mxu0 0.0
      %1105 = vmatpush.msra.mxu0 0.0
      %1106 = vmatpush.msra.mxu0 0.0
      %1107 = vmatpush.msra.mxu0 0.0
      %1108 = vmatpush.msra.mxu0 0.0
      %1109 = vmatpush.msra.mxu0 0.0
      %1110 = vmatpush.msra.mxu0 0.0
      %1111 = vmatpush.msra.mxu0 0.0
      %1112 = vmatpush.msra.mxu0 0.0
      %1113 = vmatpush.msra.mxu0 0.0
      %1114 = vmatpush.msra.mxu0 0.0
      %1115 = vmatpush.msra.mxu0 %v1095
      %1116 = vmatmul.f32.gmra.mxu0 %v1098
      %v1117 = vpop.f32.mrf.mxu0
      %v1118 = vadd.f32 0.0, %v1117
      %1119 = vdwg.mxu0
      %1120 = vrot.lane.b32.xlu0 %v109, 118
      %v1121 = vpop.permute.xlu0 %1120
      %v1124 = vsel %vm347, %v962, 0
      %1126 = vmatpush.msra.mxu0 0.0
      %1127 = vmatpush.msra.mxu0 0.0
      %1128 = vmatpush.msra.mxu0 0.0
      %1129 = vmatpush.msra.mxu0 0.0
      %1130 = vmatpush.msra.mxu0 0.0
      %1131 = vmatpush.msra.mxu0 0.0
      %1132 = vmatpush.msra.mxu0 0.0
      %1133 = vmatpush.msra.mxu0 0.0
      %1134 = vmatpush.msra.mxu0 0.0
      %1135 = vmatpush.msra.mxu0 0.0
      %1136 = vmatpush.msra.mxu0 0.0
      %1137 = vmatpush.msra.mxu0 0.0
      %1138 = vmatpush.msra.mxu0 0.0
      %1139 = vmatpush.msra.mxu0 0.0
      %1140 = vmatpush.msra.mxu0 0.0
      %1141 = vmatpush.msra.mxu0 %v1121
      %1142 = vmatmul.f32.gmra.mxu0 %v1124
      %v1143 = vpop.f32.mrf.mxu0
      %v1144 = vadd.f32 0.0, %v1143
      %1145 = vdwg.mxu0
      %1146 = vrot.lane.b32.xlu0 %v112, 118
      %v1147 = vpop.permute.xlu0 %1146
      %v1150 = vsel %vm347, %v963, 0
      %1152 = vmatpush.msra.mxu0 0.0
      %1153 = vmatpush.msra.mxu0 0.0
      %1154 = vmatpush.msra.mxu0 0.0
      %1155 = vmatpush.msra.mxu0 0.0
      %1156 = vmatpush.msra.mxu0 0.0
      %1157 = vmatpush.msra.mxu0 0.0
      %1158 = vmatpush.msra.mxu0 0.0
      %1159 = vmatpush.msra.mxu0 0.0
      %1160 = vmatpush.msra.mxu0 0.0
      %1161 = vmatpush.msra.mxu0 0.0
      %1162 = vmatpush.msra.mxu0 0.0
      %1163 = vmatpush.msra.mxu0 0.0
      %1164 = vmatpush.msra.mxu0 0.0
      %1165 = vmatpush.msra.mxu0 0.0
      %1166 = vmatpush.msra.mxu0 0.0
      %1167 = vmatpush.msra.mxu0 %v1147
      %1168 = vmatmul.f32.gmra.mxu0 %v1150
      %v1169 = vpop.f32.mrf.mxu0
      %v1170 = vadd.f32 0.0, %v1169
      %1171 = vdwg.mxu0
      %1180 = vrot.lane.b32.xlu0 %v988, 2
      %v1181 = vpop.permute.xlu0 %1180
      %1182 = vrot.lane.b32.xlu0 %v1014, 2
      %v1183 = vpop.permute.xlu0 %1182
      %1184 = vrot.lane.b32.xlu0 %v1040, 2
      %v1185 = vpop.permute.xlu0 %1184
      %1186 = vrot.lane.b32.xlu0 %v1066, 2
      %v1187 = vpop.permute.xlu0 %1186
      %1188 = vrot.lane.b32.xlu0 %v1092, 2
      %v1189 = vpop.permute.xlu0 %1188
      %1190 = vrot.lane.b32.xlu0 %v1118, 2
      %v1191 = vpop.permute.xlu0 %1190
      %1192 = vrot.lane.b32.xlu0 %v1144, 2
      %v1193 = vpop.permute.xlu0 %1192
      %1194 = vrot.lane.b32.xlu0 %v1170, 2
      %v1195 = vpop.permute.xlu0 %1194
      %vm1204 = vcmask 31760
      %1205 = vst.msk [vmem:[#allocation2] sm:$0xff] %vm1204, %v1181
      %1206 = vst.msk [vmem:[#allocation2 + $0x8] sm:$0xff] %vm1204, %v1183
      %1207 = vst.msk [vmem:[#allocation2 + $0x10] sm:$0xff] %vm1204, %v1185
      %1208 = vst.msk [vmem:[#allocation2 + $0x18] sm:$0xff] %vm1204, %v1187
      %1209 = vst.msk [vmem:[#allocation2 + $0x20] sm:$0xff] %vm1204, %v1189
      %1210 = vst.msk [vmem:[#allocation2 + $0x28] sm:$0xff] %vm1204, %v1191
      %1211 = vst.msk [vmem:[#allocation2 + $0x30] sm:$0xff] %vm1204, %v1193
      %1212 = vst.msk [vmem:[#allocation2 + $0x38] sm:$0xff] %vm1204, %v1195
      %v1213 = vld [vmem:[#allocation2] sm:$0xff]
      %v1214 = vld [vmem:[#allocation2 + $0x8] sm:$0xff]
      %v1215 = vld [vmem:[#allocation2 + $0x10] sm:$0xff]
      %v1216 = vld [vmem:[#allocation2 + $0x18] sm:$0xff]
      %v1217 = vld [vmem:[#allocation2 + $0x20] sm:$0xff]
      %v1218 = vld [vmem:[#allocation2 + $0x28] sm:$0xff]
      %v1219 = vld [vmem:[#allocation2 + $0x30] sm:$0xff]
      %v1220 = vld [vmem:[#allocation2 + $0x38] sm:$0xff]
      %v1221 = vld [vmem:[%s3] sm:$0xf]
      %v1222 = vld [vmem:[%s4] sm:$0x1]
      %v1224 = vperm.slane %v1222, 0
      %v1227 = vsel %vm44, %v1213, 0
      %v1230 = vsel %vm44, %v1214, 0
      %v1233 = vsel %vm44, %v1215, 0
      %v1236 = vsel %vm44, %v1216, 0
      %v1239 = vsel %vm44, %v1217, 0
      %v1242 = vsel %vm44, %v1218, 0
      %v1245 = vsel %vm44, %v1219, 0
      %v1248 = vsel %vm44, %v1220, 0
      %v1251 = vsel %vm69, %v1221, 0
      %1253 = vmatpush.msra.mxu0 0.0
      %1254 = vmatpush.msra.mxu0 0.0
      %1255 = vmatpush.msra.mxu0 0.0
      %1256 = vmatpush.msra.mxu0 0.0
      %1257 = vmatpush.msra.mxu0 0.0
      %1258 = vmatpush.msra.mxu0 0.0
      %1259 = vmatpush.msra.mxu0 0.0
      %1260 = vmatpush.msra.mxu0 0.0
      %1261 = vmatpush.msra.mxu0 0.0
      %1262 = vmatpush.msra.mxu0 0.0
      %1263 = vmatpush.msra.mxu0 0.0
      %1264 = vmatpush.msra.mxu0 0.0
      %1265 = vmatpush.msra.mxu0 0.0
      %1266 = vmatpush.msra.mxu0 0.0
      %1267 = vmatpush.msra.mxu0 0.0
      %1268 = vmatpush.msra.mxu0 %v1251
      %1269 = vmatmul.f32.gmra.mxu0 %v1227
      %v1270 = vpop.f32.mrf.mxu0
      %v1271 = vadd.f32 %v1224, %v1270
      %1272 = vmatmul.f32.gmra.mxu0 %v1230
      %v1273 = vpop.f32.mrf.mxu0
      %v1274 = vadd.f32 %v1224, %v1273
      %1275 = vmatmul.f32.gmra.mxu0 %v1233
      %v1276 = vpop.f32.mrf.mxu0
      %v1277 = vadd.f32 %v1224, %v1276
      %1278 = vmatmul.f32.gmra.mxu0 %v1236
      %v1279 = vpop.f32.mrf.mxu0
      %v1280 = vadd.f32 %v1224, %v1279
      %1281 = vmatmul.f32.gmra.mxu0 %v1239
      %v1282 = vpop.f32.mrf.mxu0
      %v1283 = vadd.f32 %v1224, %v1282
      %1284 = vmatmul.f32.gmra.mxu0 %v1242
      %v1285 = vpop.f32.mrf.mxu0
      %v1286 = vadd.f32 %v1224, %v1285
      %1287 = vmatmul.f32.gmra.mxu0 %v1245
      %v1288 = vpop.f32.mrf.mxu0
      %v1289 = vadd.f32 %v1224, %v1288
      %1290 = vmatmul.f32.gmra.mxu0 %v1248
      %v1291 = vpop.f32.mrf.mxu0
      %v1292 = vadd.f32 %v1224, %v1291
      %1293 = vdwg.mxu0
      %v1302 = vrot.slane %v1274, 7
      %vm1303 = vcmask 1041409
      %v1304 = vsel %vm1303, %v1302, %v1271
      %v1305 = vrot.slane %v1277, 6
      %vm1306 = vcmask 1042434
      %v1307 = vsel %vm1306, %v1305, %v1304
      %v1308 = vrot.slane %v1280, 5
      %vm1309 = vcmask 1043459
      %v1310 = vsel %vm1309, %v1308, %v1307
      %v1311 = vrot.slane %v1283, 4
      %vm1312 = vcmask 1044484
      %v1313 = vsel %vm1312, %v1311, %v1310
      %v1314 = vrot.slane %v1286, 3
      %vm1315 = vcmask 1045509
      %v1316 = vsel %vm1315, %v1314, %v1313
      %v1317 = vrot.slane %v1289, 2
      %vm1318 = vcmask 1046534
      %v1319 = vsel %vm1318, %v1317, %v1316
      %v1320 = vrot.slane %v1292, 1
      %vm1321 = vcmask 1047559
      %v1322 = vsel %vm1321, %v1320, %v1319
      %1324 = vst.msk [vmem:[#allocation3] sm:$0xff] %vm44, %v1322
      %v1325 = vsel %vm1306, %v1302, %v1271
      %v1326 = vsel %vm1309, %v1305, %v1325
      %v1327 = vsel %vm1312, %v1308, %v1326
      %v1328 = vsel %vm1315, %v1311, %v1327
      %v1329 = vsel %vm1318, %v1314, %v1328
      %v1330 = vsel %vm1321, %v1317, %v1329
      %1331 = vrot.lane.b32.xlu0 %v1330, 4
      %v1332 = vpop.permute.xlu0 %1331
      %1333 = vrot.lane.b32.xlu0 %v1320, 4
      %v1334 = vpop.permute.xlu0 %1333
      %vm1337 = vcmask 64545
      %1338 = vst.msk [vmem:[#allocation3 - $0x1] sm:$0xfe] %vm1337, %v1332
      %vm1339 = vcmask 57376
      %1340 = vst.msk [vmem:[#allocation3 + $0x7] sm:$0x1] %vm1339, %v1334
      %v1341 = vsel %vm1309, %v1302, %v1271
      %v1342 = vsel %vm1312, %v1305, %v1341
      %v1343 = vsel %vm1315, %v1308, %v1342
      %v1344 = vsel %vm1318, %v1311, %v1343
      %v1345 = vsel %vm1321, %v1314, %v1344
      %v1346 = vsel %vm1303, %v1320, %v1317
      %1347 = vrot.lane.b32.xlu0 %v1345, 8
      %v1348 = vpop.permute.xlu0 %1347
      %1349 = vrot.lane.b32.xlu0 %v1346, 8
      %v1350 = vpop.permute.xlu0 %1349
      %vm1353 = vcmask 97346
      %1354 = vst.msk [vmem:[#allocation3 - $0x2] sm:$0xfc] %vm1353, %v1348
      %vm1355 = vcmask 91200
      %1356 = vst.msk [vmem:[#allocation3 + $0x6] sm:$0x3] %vm1355, %v1350
      %v1357 = vsel %vm1312, %v1302, %v1271
      %v1358 = vsel %vm1315, %v1305, %v1357
      %v1359 = vsel %vm1318, %v1308, %v1358
      %v1360 = vsel %vm1321, %v1311, %v1359
      %v1361 = vsel %vm1303, %v1317, %v1314
      %v1362 = vsel %vm1306, %v1320, %v1361
      %1363 = vrot.lane.b32.xlu0 %v1360, 12
      %v1364 = vpop.permute.xlu0 %1363
      %1365 = vrot.lane.b32.xlu0 %v1362, 12
      %v1366 = vpop.permute.xlu0 %1365
      %vm1369 = vcmask 130147
      %1370 = vst.msk [vmem:[#allocation3 - $0x3] sm:$0xf8] %vm1369, %v1364
      %vm1371 = vcmask 125024
      %1372 = vst.msk [vmem:[#allocation3 + $0x5] sm:$0x7] %vm1371, %v1366
      %v1373 = vsel %vm1315, %v1302, %v1271
      %v1374 = vsel %vm1318, %v1305, %v1373
      %v1375 = vsel %vm1321, %v1308, %v1374
      %v1376 = vsel %vm1303, %v1314, %v1311
      %v1377 = vsel %vm1306, %v1317, %v1376
      %v1378 = vsel %vm1309, %v1320, %v1377
      %1379 = vrot.lane.b32.xlu0 %v1375, 16
      %v1380 = vpop.permute.xlu0 %1379
      %1381 = vrot.lane.b32.xlu0 %v1378, 16
      %v1382 = vpop.permute.xlu0 %1381
      %vm1385 = vcmask 162948
      %1386 = vst.msk [vmem:[#allocation3 - $0x4] sm:$0xf0] %vm1385, %v1380
      %vm1387 = vcmask 158848
      %1388 = vst.msk [vmem:[#allocation3 + $0x4] sm:$0xf] %vm1387, %v1382
      %v1389 = vsel %vm1318, %v1302, %v1271
      %v1390 = vsel %vm1321, %v1305, %v1389
      %v1391 = vsel %vm1303, %v1311, %v1308
      %v1392 = vsel %vm1306, %v1314, %v1391
      %v1393 = vsel %vm1309, %v1317, %v1392
      %v1394 = vsel %vm1312, %v1320, %v1393
      %1395 = vrot.lane.b32.xlu0 %v1390, 20
      %v1396 = vpop.permute.xlu0 %1395
      %1397 = vrot.lane.b32.xlu0 %v1394, 20
      %v1398 = vpop.permute.xlu0 %1397
      %vm1401 = vcmask 195749
      %1402 = vst.msk [vmem:[#allocation3 - $0x5] sm:$0xe0] %vm1401, %v1396
      %vm1403 = vcmask 192672
      %1404 = vst.msk [vmem:[#allocation3 + $0x3] sm:$0x1f] %vm1403, %v1398
      %v1405 = vsel %vm1321, %v1302, %v1271
      %v1406 = vsel %vm1303, %v1308, %v1305
      %v1407 = vsel %vm1306, %v1311, %v1406
      %v1408 = vsel %vm1309, %v1314, %v1407
      %v1409 = vsel %vm1312, %v1317, %v1408
      %v1410 = vsel %vm1315, %v1320, %v1409
      %1411 = vrot.lane.b32.xlu0 %v1405, 24
      %v1412 = vpop.permute.xlu0 %1411
      %1413 = vrot.lane.b32.xlu0 %v1410, 24
      %v1414 = vpop.permute.xlu0 %1413
      %vm1417 = vcmask 228550
      %1418 = vst.msk [vmem:[#allocation3 - $0x6] sm:$0xc0] %vm1417, %v1412
      %vm1419 = vcmask 226496
      %1420 = vst.msk [vmem:[#allocation3 + $0x2] sm:$0x3f] %vm1419, %v1414
      %v1421 = vsel %vm1303, %v1305, %v1302
      %v1422 = vsel %vm1306, %v1308, %v1421
      %v1423 = vsel %vm1309, %v1311, %v1422
      %v1424 = vsel %vm1312, %v1314, %v1423
      %v1425 = vsel %vm1315, %v1317, %v1424
      %v1426 = vsel %vm1318, %v1320, %v1425
      %1427 = vrot.lane.b32.xlu0 %v1271, 28
      %v1428 = vpop.permute.xlu0 %1427
      %1429 = vrot.lane.b32.xlu0 %v1426, 28
      %v1430 = vpop.permute.xlu0 %1429
      %vm1433 = vcmask 261351
      %1434 = vst.msk [vmem:[#allocation3 - $0x7] sm:$0x80] %vm1433, %v1428
      %vm1435 = vcmask 260320
      %1436 = vst.msk [vmem:[#allocation3 + $0x1] sm:$0x7f] %vm1435, %v1430
    $region33: #{tpu_custom_call.1} parent=1 // pred_fallthru
      _
    %v1437 = vld [vmem:[#allocation3] sm:$0xff]
    %v1438 = vld [vmem:[%s5] sm:$0xff]
    %v1439 = vld [vmem:[%s5 + $0x8] sm:$0xff]
    %v1440 = vld [vmem:[%s5 + $0x10] sm:$0xff]
    %v1441 = vld [vmem:[%s5 + $0x18] sm:$0xff]
    %v1442 = vld [vmem:[%s6] sm:$0x1]
    %v1444 = vperm.slane %v1442, 0
    %vm1446 = vcmask 261120
    %v1448 = vsel %vm1446, %v1437, 0
    %1450 = vmatpush.msra.mxu0 0.0
    %1451 = vmatpush.msra.mxu0 0.0
    %1452 = vmatpush.msra.mxu0 0.0
    %1453 = vmatpush.msra.mxu0 0.0
    %1454 = vmatpush.msra.mxu0 0.0
    %1455 = vmatpush.msra.mxu0 0.0
    %1456 = vmatpush.msra.mxu0 0.0
    %1457 = vmatpush.msra.mxu0 0.0
    %1458 = vmatpush.msra.mxu0 0.0
    %1459 = vmatpush.msra.mxu0 0.0
    %1460 = vmatpush.msra.mxu0 0.0
    %1461 = vmatpush.msra.mxu0 0.0
    %1462 = vmatpush.msra.mxu0 %v1441
    %1463 = vmatpush.msra.mxu0 %v1440
    %1464 = vmatpush.msra.mxu0 %v1439
    %1465 = vmatpush.msra.mxu0 %v1438
    %1466 = vmatmul.f32.gmra.mxu0 %v1448
    %v1467 = vpop.f32.mrf.mxu0
    %v1468 = vadd.f32 %v1444, %v1467
    %1469 = vdwg.mxu0
    %v1470 = vmul.f32 %v1468, 0.5
    %v1471 = vmul.f32 %v1468, 0.70710677
    %vm1472 = vcmp.ge.f32.partialorder %v1471, 0.0
    %v1473 = vsel %vm1472, 1.0, -1.0
    %v1474 = vand.u32 2147483647, %v1471
    %v1475 = vmul.f32 %v1474, 0.3275911
    %v1476 = vadd.f32 %v1475, 1.0
    %v1477 = vrcp.pop %v1476
    %v1478 = vmul.f32 %v1477, 1.0614054
    %v1479 = vadd.f32 %v1478, -1.4531521
    %v1480 = vmul.f32 %v1479, %v1477
    %v1481 = vadd.f32 %v1480, 1.4214138
    %v1482 = vmul.f32 %v1481, %v1477
    %v1483 = vadd.f32 %v1482, -0.28449672
    %v1484 = vmul.f32 %v1483, %v1477
    %v1485 = vadd.f32 %v1484, 0.2548296
    %v1486 = vmul.f32 %v1485, %v1477
    %v1487 = vsub.f32 0.0, %v1474
    %v1488 = vmul.f32 %v1487, %v1474
    %v1489 = vmul.f32 %v1488, 1.442695
    %v1490 = vpow.pop %v1489
    %v1491 = vmul.f32 %v1486, %v1490
    %v1492 = vsub.f32 1.0, %v1491
    %v1493 = vmul.f32 %v1473, %v1492
    %v1494 = vadd.f32 %v1493, 1.0
    %v1495 = vmul.f32 %v1470, %v1494
    %1496 = vst.msk [vmem:[#allocation4] sm:$0xff] %vm1446, %v1495
    // Predicated region
    $region34: #{tpu_custom_call.1} parent=1 // pred_check
      _
    $region35: #{tpu_custom_call.1} parent=1 // pred_check_branch
      %1498 = sbr.rel (0) target = $region37
    $region36: #{tpu_custom_call.1} parent=1 // pred_region
      %1500 = vsyncadd [#allocation5], 0
      %s1502 = sshll.u32 [#allocation4], 4
      %s1503 = int_to_ptr.vmem [resolvable:$true] %s1502
      %s1504 = sshll.u32 %s7, 4
      %s1505 = int_to_ptr.hbm [resolvable:$true] %s1504
      %1507 = dma.vmem_to_hbm [thread:$0]  %s1503, 128, %s1505, [#allocation5]
    $region37: #{tpu_custom_call.1} parent=1 // pred_fallthru
      _
    // Predicated region
    $region38: #{tpu_custom_call.1} parent=1 // pred_check
      _
    $region39: #{tpu_custom_call.1} parent=1 // pred_check_branch
      %1509 = sbr.rel (0) target = $region41
    $region40: #{tpu_custom_call.1} parent=1 // pred_region
      %1511 = dma.done [#allocation5], 128
    $region41: #{tpu_custom_call.1} parent=1 // pred_fallthru
      _
    %1512 = vsyncpa [#allocation5], 1

</llo_original>
